<compile_context>
chip_gen: v5e
topology: v5e:2x2
jax: 0.10.0
libtpu: 0.0.40
codegen_flags: <defaults>
</compile_context>

<pallas_src>
import functools

import jax
import jax.numpy as jnp
from jax.experimental import pallas as pl
from jax.experimental.pallas import tpu as pltpu


# ----------------------------------------------------------------------------
# Concrete architecture (mirrors net_arch = [{'vf': [32], 'qf': [32]}, 64, 32])
# ----------------------------------------------------------------------------
STATE_DIM = 16
ACTION_DIM = 8
VF_LAYERS = [32]          # vf_only_layers
QF_LAYERS = [32]          # qf_only_layers
SHARED_LAYERS = [64, 32]  # shared_net int entries
BATCH = 8

D_PAD = 128               # lane width: every feature dim zero-padded to 128


def _pad2d(x, rows, cols):
    r, c = x.shape
    return jnp.pad(x, ((0, rows - r), (0, cols - c)))


# ----------------------------------------------------------------------------
# Kernel
# ----------------------------------------------------------------------------
def _fused_kernel(n_vf, n_qf, n_sh, s_ref, a_ref, w_ref, b_ref, out_ref):
    """Fully fused forward pass on lane-dense (8, 128) tiles.

    w_ref : (n_vf + n_qf + n_sh + 1, 128, 128)  zero-padded weights; the first
            shared-layer weight is pre-split into a vf part and a qf part, so
            no axis-1 concat is needed inside the kernel.
    b_ref : (ceil8(n_vf + n_qf + n_sh), 128)    zero-padded bias rows.
    """
    dot = functools.partial(
        jnp.dot,
        preferred_element_type=jnp.float32,
        precision=jax.lax.Precision.HIGHEST,
    )
    biases = b_ref[...]  # tiny (8, 128); load once

    def layer(h, w_idx, b_idx):
        return jnp.maximum(
            dot(h, w_ref[w_idx]) + biases[b_idx:b_idx + 1, :], 0.0)

    # vf branch (states)
    h_vf = s_ref[...]
    for i in range(n_vf):
        h_vf = layer(h_vf, i, i)

    # qf branch (actions)
    h_qf = a_ref[...]
    for i in range(n_qf):
        h_qf = layer(h_qf, n_vf + i, n_vf + i)

    # shared net: first layer consumes the split weight (concat eliminated)
    w_base = n_vf + n_qf
    b_base = n_vf + n_qf
    h = jnp.maximum(
        dot(h_vf, w_ref[w_base])
        + dot(h_qf, w_ref[w_base + 1])
        + biases[b_base:b_base + 1, :],
        0.0,
    )
    for i in range(1, n_sh):
        h = layer(h, w_base + 1 + i, b_base + i)

    out_ref[...] = h


# ----------------------------------------------------------------------------
# Wrapper: pack params into slabs, pad inputs, call pallas_call once.
# ----------------------------------------------------------------------------
def _pack_params(vf_params, qf_params, sh_params, state_dim, action_dim):
    assert len(sh_params) >= 1, "packed kernel path requires >=1 shared layer"
    vf_out = vf_params[-1][0].shape[1] if vf_params else state_dim
    qf_out = qf_params[-1][0].shape[1] if qf_params else action_dim

    w_list, b_list = [], []
    for w, b in vf_params:
        w_list.append(_pad2d(w, D_PAD, D_PAD))
        b_list.append(_pad2d(b.reshape(1, -1), 1, D_PAD))
    for w, b in qf_params:
        w_list.append(_pad2d(w, D_PAD, D_PAD))
        b_list.append(_pad2d(b.reshape(1, -1), 1, D_PAD))

    # Split the first shared-layer weight: rows [0:vf_out] act on latent_vf,
    # rows [vf_out:] act on latent_qf (matches torch.cat((vf, qf), dim=1)).
    w0, b0 = sh_params[0]
    w_list.append(_pad2d(w0[:vf_out, :], D_PAD, D_PAD))
    w_list.append(_pad2d(w0[vf_out:, :], D_PAD, D_PAD))
    b_list.append(_pad2d(b0.reshape(1, -1), 1, D_PAD))
    for w, b in sh_params[1:]:
        w_list.append(_pad2d(w, D_PAD, D_PAD))
        b_list.append(_pad2d(b.reshape(1, -1), 1, D_PAD))

    w_slab = jnp.stack(w_list, axis=0).astype(jnp.float32)
    b_slab = jnp.concatenate(b_list, axis=0).astype(jnp.float32)
    n_b = b_slab.shape[0]
    n_b_pad = ((n_b + 7) // 8) * 8
    b_slab = jnp.pad(b_slab, ((0, n_b_pad - n_b), (0, 0)))
    return w_slab, b_slab


def dualing_fore_forward(states, actions, vf_params, qf_params, sh_params):
    batch = states.shape[0]
    batch_pad = ((batch + 7) // 8) * 8

    s_pad = _pad2d(states.astype(jnp.float32), batch_pad, D_PAD)
    a_pad = _pad2d(actions.astype(jnp.float32), batch_pad, D_PAD)
    w_slab, b_slab = _pack_params(
        vf_params, qf_params, sh_params, states.shape[1], actions.shape[1])

    out_dim = sh_params[-1][0].shape[1]
    kernel = functools.partial(
        _fused_kernel, len(vf_params), len(qf_params), len(sh_params))

    vmem_spec = pl.BlockSpec(memory_space=pltpu.MemorySpace.VMEM)
    out_pad = pl.pallas_call(
        kernel,
        out_shape=jax.ShapeDtypeStruct((batch_pad, D_PAD), jnp.float32),
        in_specs=[vmem_spec] * 4,
        out_specs=vmem_spec,
    )(s_pad, a_pad, w_slab, b_slab)

    return out_pad[:batch, :out_dim]


# ----------------------------------------------------------------------------
# Deterministic parameter construction (synthetic weights, not a checkpoint).
# Weights stored as (in_dim, out_dim) so kernel does x @ W + b (== x @ W_pt.T).
# ----------------------------------------------------------------------------
def _make_linear(key, in_dim, out_dim):
    kw, kb = jax.random.split(key)
    bound = 1.0 / jnp.sqrt(in_dim)
    w = jax.random.uniform(kw, (in_dim, out_dim), jnp.float32, -bound, bound)
    b = jax.random.uniform(kb, (1, out_dim), jnp.float32, -bound, bound)
    return w, b


def _make_mlp(key, in_dim, layer_dims):
    params = []
    last = in_dim
    for d in layer_dims:
        key, sub = jax.random.split(key)
        params.append(_make_linear(sub, last, d))
        last = d
    return params, last


def _reference(states, actions, vf_params, qf_params, sh_params):
    hi = jax.lax.Precision.HIGHEST

    def mlp(x, params):
        for w, b in params:
            x = jnp.maximum(jnp.dot(x, w, precision=hi) + b, 0.0)
        return x

    vf = mlp(states, vf_params)
    qf = mlp(actions, qf_params)
    return mlp(jnp.concatenate([vf, qf], axis=1), sh_params)


if __name__ == "__main__":
    key = jax.random.PRNGKey(0)
    k_s, k_a, k_vf, k_qf, k_sh = jax.random.split(key, 5)

    states = jax.random.normal(k_s, (BATCH, STATE_DIM), jnp.float32)
    actions = jax.random.normal(k_a, (BATCH, ACTION_DIM), jnp.float32)

    vf_params, vf_out = _make_mlp(k_vf, STATE_DIM, VF_LAYERS)
    qf_params, qf_out = _make_mlp(k_qf, ACTION_DIM, QF_LAYERS)
    sh_params, _ = _make_mlp(k_sh, vf_out + qf_out, SHARED_LAYERS)

    out = dualing_fore_forward(states, actions, vf_params, qf_params, sh_params)
    out = jax.block_until_ready(out)

    ref = _reference(states, actions, vf_params, qf_params, sh_params)
    assert out.shape == (BATCH, SHARED_LAYERS[-1])
    assert jnp.allclose(out, ref, atol=1e-5, rtol=1e-5)

    print("KERNEL_OK")
</pallas_src>

<mosaic_0001>
module attributes {stable_mosaic.version = 11 : i64} {
  func.func @_fused_kernel(%arg0: memref<8x128xf32, #tpu.memory_space<vmem>>, %arg1: memref<8x128xf32, #tpu.memory_space<vmem>>, %arg2: memref<5x128x128xf32, #tpu.memory_space<vmem>>, %arg3: memref<8x128xf32, #tpu.memory_space<vmem>>, %arg4: memref<8x128xf32, #tpu.memory_space<vmem>>) attributes {dimension_semantics = [], scalar_prefetch = 0 : i64, scratch_operands = 0 : i64, tpu.core_type = #tpu.core_type<tc>} {
    %c0 = arith.constant 0 : index
    %c0_0 = arith.constant 0 : index
    %0 = vector.load %arg3[%c0, %c0_0] : memref<8x128xf32, #tpu.memory_space<vmem>>, vector<8x128xf32>
    %c0_1 = arith.constant 0 : index
    %c0_2 = arith.constant 0 : index
    %1 = vector.load %arg0[%c0_1, %c0_2] : memref<8x128xf32, #tpu.memory_space<vmem>>, vector<8x128xf32>
    %c0_3 = arith.constant 0 : index
    %c0_4 = arith.constant 0 : index
    %c0_5 = arith.constant 0 : index
    %2 = vector.load %arg2[%c0_3, %c0_4, %c0_5] : memref<5x128x128xf32, #tpu.memory_space<vmem>>, vector<1x128x128xf32>
    %3 = vector.shape_cast %2 : vector<1x128x128xf32> to vector<128x128xf32>
    %cst = arith.constant dense<0.000000e+00> : vector<8x128xf32>
    %4 = tpu.matmul %1, %3, %cst {dimension_numbers = #tpu.dot_dimension_numbers<[1], [0], [0], [1], [0, 0, 1, 1], [], []>, precision = #tpu.contract_precision<fp32>} : vector<8x128xf32>, vector<128x128xf32>, vector<8x128xf32> -> vector<8x128xf32>
    %5 = vector.extract_strided_slice %0 {offsets = [0, 0], sizes = [1, 128], strides = [1, 1]} : vector<8x128xf32> to vector<1x128xf32>
    %6 = vector.broadcast %5 : vector<1x128xf32> to vector<8x128xf32>
    %7 = arith.addf %4, %6 : vector<8x128xf32>
    %cst_6 = arith.constant 0.000000e+00 : f32
    %8 = vector.broadcast %cst_6 : f32 to vector<8x128xf32>
    %9 = arith.maximumf %7, %8 : vector<8x128xf32>
    %c0_7 = arith.constant 0 : index
    %c0_8 = arith.constant 0 : index
    %10 = vector.load %arg1[%c0_7, %c0_8] : memref<8x128xf32, #tpu.memory_space<vmem>>, vector<8x128xf32>
    %c1 = arith.constant 1 : index
    %c0_9 = arith.constant 0 : index
    %c0_10 = arith.constant 0 : index
    %11 = vector.load %arg2[%c1, %c0_9, %c0_10] : memref<5x128x128xf32, #tpu.memory_space<vmem>>, vector<1x128x128xf32>
    %12 = vector.shape_cast %11 : vector<1x128x128xf32> to vector<128x128xf32>
    %cst_11 = arith.constant dense<0.000000e+00> : vector<8x128xf32>
    %13 = tpu.matmul %10, %12, %cst_11 {dimension_numbers = #tpu.dot_dimension_numbers<[1], [0], [0], [1], [0, 0, 1, 1], [], []>, precision = #tpu.contract_precision<fp32>} : vector<8x128xf32>, vector<128x128xf32>, vector<8x128xf32> -> vector<8x128xf32>
    %14 = vector.extract_strided_slice %0 {offsets = [1, 0], sizes = [1, 128], strides = [1, 1]} : vector<8x128xf32> to vector<1x128xf32>
    %15 = vector.broadcast %14 : vector<1x128xf32> to vector<8x128xf32>
    %16 = arith.addf %13, %15 : vector<8x128xf32>
    %cst_12 = arith.constant 0.000000e+00 : f32
    %17 = vector.broadcast %cst_12 : f32 to vector<8x128xf32>
    %18 = arith.maximumf %16, %17 : vector<8x128xf32>
    %c2 = arith.constant 2 : index
    %c0_13 = arith.constant 0 : index
    %c0_14 = arith.constant 0 : index
    %19 = vector.load %arg2[%c2, %c0_13, %c0_14] : memref<5x128x128xf32, #tpu.memory_space<vmem>>, vector<1x128x128xf32>
    %20 = vector.shape_cast %19 : vector<1x128x128xf32> to vector<128x128xf32>
    %cst_15 = arith.constant dense<0.000000e+00> : vector<8x128xf32>
    %21 = tpu.matmul %9, %20, %cst_15 {dimension_numbers = #tpu.dot_dimension_numbers<[1], [0], [0], [1], [0, 0, 1, 1], [], []>, precision = #tpu.contract_precision<fp32>} : vector<8x128xf32>, vector<128x128xf32>, vector<8x128xf32> -> vector<8x128xf32>
    %c3 = arith.constant 3 : index
    %c0_16 = arith.constant 0 : index
    %c0_17 = arith.constant 0 : index
    %22 = vector.load %arg2[%c3, %c0_16, %c0_17] : memref<5x128x128xf32, #tpu.memory_space<vmem>>, vector<1x128x128xf32>
    %23 = vector.shape_cast %22 : vector<1x128x128xf32> to vector<128x128xf32>
    %cst_18 = arith.constant dense<0.000000e+00> : vector<8x128xf32>
    %24 = tpu.matmul %18, %23, %cst_18 {dimension_numbers = #tpu.dot_dimension_numbers<[1], [0], [0], [1], [0, 0, 1, 1], [], []>, precision = #tpu.contract_precision<fp32>} : vector<8x128xf32>, vector<128x128xf32>, vector<8x128xf32> -> vector<8x128xf32>
    %25 = arith.addf %21, %24 : vector<8x128xf32>
    %26 = vector.extract_strided_slice %0 {offsets = [2, 0], sizes = [1, 128], strides = [1, 1]} : vector<8x128xf32> to vector<1x128xf32>
    %27 = vector.broadcast %26 : vector<1x128xf32> to vector<8x128xf32>
    %28 = arith.addf %25, %27 : vector<8x128xf32>
    %cst_19 = arith.constant 0.000000e+00 : f32
    %29 = vector.broadcast %cst_19 : f32 to vector<8x128xf32>
    %30 = arith.maximumf %28, %29 : vector<8x128xf32>
    %c4 = arith.constant 4 : index
    %c0_20 = arith.constant 0 : index
    %c0_21 = arith.constant 0 : index
    %31 = vector.load %arg2[%c4, %c0_20, %c0_21] : memref<5x128x128xf32, #tpu.memory_space<vmem>>, vector<1x128x128xf32>
    %32 = vector.shape_cast %31 : vector<1x128x128xf32> to vector<128x128xf32>
    %cst_22 = arith.constant dense<0.000000e+00> : vector<8x128xf32>
    %33 = tpu.matmul %30, %32, %cst_22 {dimension_numbers = #tpu.dot_dimension_numbers<[1], [0], [0], [1], [0, 0, 1, 1], [], []>, precision = #tpu.contract_precision<fp32>} : vector<8x128xf32>, vector<128x128xf32>, vector<8x128xf32> -> vector<8x128xf32>
    %34 = vector.extract_strided_slice %0 {offsets = [3, 0], sizes = [1, 128], strides = [1, 1]} : vector<8x128xf32> to vector<1x128xf32>
    %35 = vector.broadcast %34 : vector<1x128xf32> to vector<8x128xf32>
    %36 = arith.addf %33, %35 : vector<8x128xf32>
    %cst_23 = arith.constant 0.000000e+00 : f32
    %37 = vector.broadcast %cst_23 : f32 to vector<8x128xf32>
    %38 = arith.maximumf %36, %37 : vector<8x128xf32>
    %c0_24 = arith.constant 0 : index
    %c0_25 = arith.constant 0 : index
    %39 = vector.load %arg4[%c0_24, %c0_25] : memref<8x128xf32, #tpu.memory_space<vmem>>, vector<8x128xf32>
    tpu.vector_store %arg4[%c0_24, %c0_25], %38 {strides = array<i32>} : memref<8x128xf32, #tpu.memory_space<vmem>>, vector<8x128xf32>,
    return
  }
}

</mosaic_0001>

<llo_original>
// kernel: tpu_custom_call.1
$region0: #{tpu_custom_call.1}
  #allocation0 [shape = 'u32[]', space=smem, size = 0x4, offset = 0x4, fixed_abs, tag = 'smem constant byte address 0x4 - core index']
  #allocation1 [shape = 'u32[72,128]{1,0:T(1,128)}', space=vmem, size = 0x9000, scoped, tag = 'internal scratch']
  %s0 = inlined_call_operand.hbm [shape: f32[8,128], index: 0, kind: input, shape index: {}]
  %s1 = inlined_call_operand.hbm [shape: f32[8,128], index: 1, kind: input, shape index: {}]
  %s2 = inlined_call_operand.hbm [shape: f32[5,128,128], index: 2, kind: input, shape index: {}]
  %s3 = inlined_call_operand.hbm [shape: f32[8,128], index: 3, kind: input, shape index: {}]
  %s4 = inlined_call_operand.hbm [shape: f32[8,128], index: 4, kind: output, shape index: {}]
  %s5 = sld [smem:[#allocation0]]
  $region42: #{tpu_custom_call.1} parent=0
    _
  %s7 = ssub.s32 1, %s5
  %s8 = scalar_select 0, %s7, %s5
  $region1: #{tpu_custom_call.1} parent=0
    #allocation2 [shape = 'u8[4096]{0}', space=vmem, size = 0x1000, scoped, tag = 'input window, operand 0, single buffered']
    #allocation3 [shape = 's32[1]{0}', space=sflag, size = 0x4, scoped, tag = 'scoped memory for tpu_custom_call.1']
    #allocation4 [shape = 's32[1]{0}', space=sflag, size = 0x4, scoped, tag = 'scoped memory for tpu_custom_call.1']
    #allocation5 [shape = 'u8[4096]{0}', space=vmem, size = 0x1000, scoped, tag = 'input window, operand 1, single buffered']
    #allocation6 [shape = 's32[1]{0}', space=sflag, size = 0x4, scoped, tag = 'scoped memory for tpu_custom_call.1']
    #allocation7 [shape = 'u8[327680]{0}', space=vmem, size = 0x50000, scoped, tag = 'input window, operand 2, single buffered']
    #allocation8 [shape = 'u8[4096]{0}', space=vmem, size = 0x1000, scoped, tag = 'input window, operand 3, single buffered']
    #allocation9 [shape = 's32[1]{0}', space=sflag, size = 0x4, scoped, tag = 'scoped memory for tpu_custom_call.1']
    #allocation10 [shape = 'u8[4096]{0}', space=vmem, size = 0x1000, scoped, tag = 'output window, operand 0, single buffered']
    %9 = vsyncpa [#allocation3], 0
    %10 = vsyncpa [#allocation6], 0
    %11 = vsyncpa [#allocation9], 0
    %12 = vsyncpa [#allocation4], 0
    // Predicated region
    $region2: #{tpu_custom_call.1} parent=1 // pred_check
      _
    $region3: #{tpu_custom_call.1} parent=1 // pred_check_branch
      %14 = sbr.rel (0) target = $region5
    $region4: #{tpu_custom_call.1} parent=1 // pred_region
      %16 = vsyncadd [#allocation3], 0
      %s18 = sshll.u32 %s0, 4
      %s19 = int_to_ptr.hbm [resolvable:$true] %s18
      %s20 = sshll.u32 [#allocation2], 4
      %s21 = int_to_ptr.vmem [resolvable:$true] %s20
      %23 = dma.hbm_to_vmem [thread:$0]  %s19, 128, %s21, [#allocation3]
    $region5: #{tpu_custom_call.1} parent=1 // pred_fallthru
      _
    // Predicated region
    $region6: #{tpu_custom_call.1} parent=1 // pred_check
      _
    $region7: #{tpu_custom_call.1} parent=1 // pred_check_branch
      %25 = sbr.rel (0) target = $region9
    $region8: #{tpu_custom_call.1} parent=1 // pred_region
      %27 = vsyncadd [#allocation6], 0
      %s29 = sshll.u32 %s1, 4
      %s30 = int_to_ptr.hbm [resolvable:$true] %s29
      %s31 = sshll.u32 [#allocation5], 4
      %s32 = int_to_ptr.vmem [resolvable:$true] %s31
      %34 = dma.hbm_to_vmem [thread:$0]  %s30, 128, %s32, [#allocation6]
    $region9: #{tpu_custom_call.1} parent=1 // pred_fallthru
      _
    // Predicated region
    $region10: #{tpu_custom_call.1} parent=1 // pred_check
      _
    $region11: #{tpu_custom_call.1} parent=1 // pred_check_branch
      %36 = sbr.rel (0) target = $region13
    $region12: #{tpu_custom_call.1} parent=1 // pred_region
      %38 = vsyncadd [#allocation6], 0
      %s39 = sshll.u32 %s2, 4
      %s40 = int_to_ptr.hbm [resolvable:$true] %s39
      %s41 = sshll.u32 [#allocation7], 4
      %s42 = int_to_ptr.vmem [resolvable:$true] %s41
      %47 = dma.hbm_to_vmem [thread:$0]  %s40, 10240, %s42, [#allocation6], 128, 128, 8
    $region13: #{tpu_custom_call.1} parent=1 // pred_fallthru
      _
    // Predicated region
    $region14: #{tpu_custom_call.1} parent=1 // pred_check
      _
    $region15: #{tpu_custom_call.1} parent=1 // pred_check_branch
      %49 = sbr.rel (0) target = $region17
    $region16: #{tpu_custom_call.1} parent=1 // pred_region
      %51 = vsyncadd [#allocation9], 0
      %s53 = sshll.u32 %s3, 4
      %s54 = int_to_ptr.hbm [resolvable:$true] %s53
      %s55 = sshll.u32 [#allocation8], 4
      %s56 = int_to_ptr.vmem [resolvable:$true] %s55
      %58 = dma.hbm_to_vmem [thread:$0]  %s54, 128, %s56, [#allocation9]
    $region17: #{tpu_custom_call.1} parent=1 // pred_fallthru
      _
    // Predicated region
    $region18: #{tpu_custom_call.1} parent=1 // pred_check
      _
    $region19: #{tpu_custom_call.1} parent=1 // pred_check_branch
      %60 = sbr.rel (0) target = $region21
    $region20: #{tpu_custom_call.1} parent=1 // pred_region
      %62 = dma.done [#allocation3], 128
    $region21: #{tpu_custom_call.1} parent=1 // pred_fallthru
      _
    // Predicated region
    $region22: #{tpu_custom_call.1} parent=1 // pred_check
      _
    $region23: #{tpu_custom_call.1} parent=1 // pred_check_branch
      %64 = sbr.rel (0) target = $region25
    $region24: #{tpu_custom_call.1} parent=1 // pred_region
      %66 = dma.done [#allocation6], 128
    $region25: #{tpu_custom_call.1} parent=1 // pred_fallthru
      _
    // Predicated region
    $region26: #{tpu_custom_call.1} parent=1 // pred_check
      _
    $region27: #{tpu_custom_call.1} parent=1 // pred_check_branch
      %68 = sbr.rel (0) target = $region29
    $region28: #{tpu_custom_call.1} parent=1 // pred_region
      %70 = dma.done [#allocation6], 10240
    $region29: #{tpu_custom_call.1} parent=1 // pred_fallthru
      _
    // Predicated region
    $region30: #{tpu_custom_call.1} parent=1 // pred_check
      _
    $region31: #{tpu_custom_call.1} parent=1 // pred_check_branch
      %72 = sbr.rel (0) target = $region33
    $region32: #{tpu_custom_call.1} parent=1 // pred_region
      %74 = dma.done [#allocation9], 128
    $region33: #{tpu_custom_call.1} parent=1 // pred_fallthru
      _
    %v75 = vld [vmem:[#allocation8] sm:$0xff]
    %v76 = vld [vmem:[#allocation2] sm:$0xff]
    %v77 = vld [vmem:[#allocation7] sm:$0xff]
    %v78 = vld [vmem:[#allocation7 + $0x8] sm:$0xff]
    %v79 = vld [vmem:[#allocation7 + $0x10] sm:$0xff]
    %v80 = vld [vmem:[#allocation7 + $0x18] sm:$0xff]
    %v81 = vld [vmem:[#allocation7 + $0x20] sm:$0xff]
    %v82 = vld [vmem:[#allocation7 + $0x28] sm:$0xff]
    %v83 = vld [vmem:[#allocation7 + $0x30] sm:$0xff]
    %v84 = vld [vmem:[#allocation7 + $0x38] sm:$0xff]
    %v85 = vld [vmem:[#allocation7 + $0x40] sm:$0xff]
    %v86 = vld [vmem:[#allocation7 + $0x48] sm:$0xff]
    %v87 = vld [vmem:[#allocation7 + $0x50] sm:$0xff]
    %v88 = vld [vmem:[#allocation7 + $0x58] sm:$0xff]
    %v89 = vld [vmem:[#allocation7 + $0x60] sm:$0xff]
    %v90 = vld [vmem:[#allocation7 + $0x68] sm:$0xff]
    %v91 = vld [vmem:[#allocation7 + $0x70] sm:$0xff]
    %v92 = vld [vmem:[#allocation7 + $0x78] sm:$0xff]
    %v93 = vperm.slane %v75, 0
    %v94 = vand.u32 %v92, 4294901760
    %95 = vmatpush.msra.mxu0 %v94
    %v96 = vand.u32 %v91, 4294901760
    %97 = vmatpush.msra.mxu0 %v96
    %v98 = vand.u32 %v90, 4294901760
    %99 = vmatpush.msra.mxu0 %v98
    %v100 = vand.u32 %v89, 4294901760
    %101 = vmatpush.msra.mxu0 %v100
    %v102 = vand.u32 %v88, 4294901760
    %103 = vmatpush.msra.mxu0 %v102
    %v104 = vand.u32 %v87, 4294901760
    %105 = vmatpush.msra.mxu0 %v104
    %v106 = vand.u32 %v86, 4294901760
    %107 = vmatpush.msra.mxu0 %v106
    %v108 = vand.u32 %v85, 4294901760
    %109 = vmatpush.msra.mxu0 %v108
    %v110 = vand.u32 %v84, 4294901760
    %111 = vmatpush.msra.mxu0 %v110
    %v112 = vand.u32 %v83, 4294901760
    %113 = vmatpush.msra.mxu0 %v112
    %v114 = vand.u32 %v82, 4294901760
    %115 = vmatpush.msra.mxu0 %v114
    %v116 = vand.u32 %v81, 4294901760
    %117 = vmatpush.msra.mxu0 %v116
    %v118 = vand.u32 %v80, 4294901760
    %119 = vmatpush.msra.mxu0 %v118
    %v120 = vand.u32 %v79, 4294901760
    %121 = vmatpush.msra.mxu0 %v120
    %v122 = vand.u32 %v78, 4294901760
    %123 = vmatpush.msra.mxu0 %v122
    %v124 = vand.u32 %v77, 4294901760
    %125 = vmatpush.msra.mxu0 %v124
    %v126 = vand.u32 %v76, 4294901760
    %v127 = vsub.f32 %v76, %v126
    %v128 = vand.u32 %v127, 4294901760
    %v129 = vsub.f32 %v127, %v128
    %v130 = vand.u32 %v129, 4294901760
    %131 = vmatmul.f32.gmra.mxu0 %v130
    %v132 = vpop.f32.mrf.mxu0
    %v133 = vadd.f32 %v93, %v132
    %134 = vdwg.mxu0
    %v135 = vand.u32 %v92, 4294901760
    %v136 = vsub.f32 %v92, %v135
    %v137 = vand.u32 %v136, 4294901760
    %v138 = vsub.f32 %v136, %v137
    %v139 = vand.u32 %v138, 4294901760
    %140 = vmatpush.msra.mxu0 %v139
    %v141 = vand.u32 %v91, 4294901760
    %v142 = vsub.f32 %v91, %v141
    %v143 = vand.u32 %v142, 4294901760
    %v144 = vsub.f32 %v142, %v143
    %v145 = vand.u32 %v144, 4294901760
    %146 = vmatpush.msra.mxu0 %v145
    %v147 = vand.u32 %v90, 4294901760
    %v148 = vsub.f32 %v90, %v147
    %v149 = vand.u32 %v148, 4294901760
    %v150 = vsub.f32 %v148, %v149
    %v151 = vand.u32 %v150, 4294901760
    %152 = vmatpush.msra.mxu0 %v151
    %v153 = vand.u32 %v89, 4294901760
    %v154 = vsub.f32 %v89, %v153
    %v155 = vand.u32 %v154, 4294901760
    %v156 = vsub.f32 %v154, %v155
    %v157 = vand.u32 %v156, 4294901760
    %158 = vmatpush.msra.mxu0 %v157
    %v159 = vand.u32 %v88, 4294901760
    %v160 = vsub.f32 %v88, %v159
    %v161 = vand.u32 %v160, 4294901760
    %v162 = vsub.f32 %v160, %v161
    %v163 = vand.u32 %v162, 4294901760
    %164 = vmatpush.msra.mxu0 %v163
    %v165 = vand.u32 %v87, 4294901760
    %v166 = vsub.f32 %v87, %v165
    %v167 = vand.u32 %v166, 4294901760
    %v168 = vsub.f32 %v166, %v167
    %v169 = vand.u32 %v168, 4294901760
    %170 = vmatpush.msra.mxu0 %v169
    %v171 = vand.u32 %v86, 4294901760
    %v172 = vsub.f32 %v86, %v171
    %v173 = vand.u32 %v172, 4294901760
    %v174 = vsub.f32 %v172, %v173
    %v175 = vand.u32 %v174, 4294901760
    %176 = vmatpush.msra.mxu0 %v175
    %v177 = vand.u32 %v85, 4294901760
    %v178 = vsub.f32 %v85, %v177
    %v179 = vand.u32 %v178, 4294901760
    %v180 = vsub.f32 %v178, %v179
    %v181 = vand.u32 %v180, 4294901760
    %182 = vmatpush.msra.mxu0 %v181
    %v183 = vand.u32 %v84, 4294901760
    %v184 = vsub.f32 %v84, %v183
    %v185 = vand.u32 %v184, 4294901760
    %v186 = vsub.f32 %v184, %v185
    %v187 = vand.u32 %v186, 4294901760
    %188 = vmatpush.msra.mxu0 %v187
    %v189 = vand.u32 %v83, 4294901760
    %v190 = vsub.f32 %v83, %v189
    %v191 = vand.u32 %v190, 4294901760
    %v192 = vsub.f32 %v190, %v191
    %v193 = vand.u32 %v192, 4294901760
    %194 = vmatpush.msra.mxu0 %v193
    %v195 = vand.u32 %v82, 4294901760
    %v196 = vsub.f32 %v82, %v195
    %v197 = vand.u32 %v196, 4294901760
    %v198 = vsub.f32 %v196, %v197
    %v199 = vand.u32 %v198, 4294901760
    %200 = vmatpush.msra.mxu0 %v199
    %v201 = vand.u32 %v81, 4294901760
    %v202 = vsub.f32 %v81, %v201
    %v203 = vand.u32 %v202, 4294901760
    %v204 = vsub.f32 %v202, %v203
    %v205 = vand.u32 %v204, 4294901760
    %206 = vmatpush.msra.mxu0 %v205
    %v207 = vand.u32 %v80, 4294901760
    %v208 = vsub.f32 %v80, %v207
    %v209 = vand.u32 %v208, 4294901760
    %v210 = vsub.f32 %v208, %v209
    %v211 = vand.u32 %v210, 4294901760
    %212 = vmatpush.msra.mxu0 %v211
    %v213 = vand.u32 %v79, 4294901760
    %v214 = vsub.f32 %v79, %v213
    %v215 = vand.u32 %v214, 4294901760
    %v216 = vsub.f32 %v214, %v215
    %v217 = vand.u32 %v216, 4294901760
    %218 = vmatpush.msra.mxu0 %v217
    %v219 = vand.u32 %v78, 4294901760
    %v220 = vsub.f32 %v78, %v219
    %v221 = vand.u32 %v220, 4294901760
    %v222 = vsub.f32 %v220, %v221
    %v223 = vand.u32 %v222, 4294901760
    %224 = vmatpush.msra.mxu0 %v223
    %v225 = vand.u32 %v77, 4294901760
    %v226 = vsub.f32 %v77, %v225
    %v227 = vand.u32 %v226, 4294901760
    %v228 = vsub.f32 %v226, %v227
    %v229 = vand.u32 %v228, 4294901760
    %230 = vmatpush.msra.mxu0 %v229
    %v231 = vand.u32 %v76, 4294901760
    %232 = vmatmul.f32.gmra.mxu0 %v231
    %v233 = vpop.f32.mrf.mxu0
    %v234 = vadd.f32 %v133, %v233
    %235 = vdwg.mxu0
    %v236 = vand.u32 %v92, 4294901760
    %v237 = vsub.f32 %v92, %v236
    %238 = vmatpush.msra.mxu0 %v237
    %v239 = vand.u32 %v91, 4294901760
    %v240 = vsub.f32 %v91, %v239
    %241 = vmatpush.msra.mxu0 %v240
    %v242 = vand.u32 %v90, 4294901760
    %v243 = vsub.f32 %v90, %v242
    %244 = vmatpush.msra.mxu0 %v243
    %v245 = vand.u32 %v89, 4294901760
    %v246 = vsub.f32 %v89, %v245
    %247 = vmatpush.msra.mxu0 %v246
    %v248 = vand.u32 %v88, 4294901760
    %v249 = vsub.f32 %v88, %v248
    %250 = vmatpush.msra.mxu0 %v249
    %v251 = vand.u32 %v87, 4294901760
    %v252 = vsub.f32 %v87, %v251
    %253 = vmatpush.msra.mxu0 %v252
    %v254 = vand.u32 %v86, 4294901760
    %v255 = vsub.f32 %v86, %v254
    %256 = vmatpush.msra.mxu0 %v255
    %v257 = vand.u32 %v85, 4294901760
    %v258 = vsub.f32 %v85, %v257
    %259 = vmatpush.msra.mxu0 %v258
    %v260 = vand.u32 %v84, 4294901760
    %v261 = vsub.f32 %v84, %v260
    %262 = vmatpush.msra.mxu0 %v261
    %v263 = vand.u32 %v83, 4294901760
    %v264 = vsub.f32 %v83, %v263
    %265 = vmatpush.msra.mxu0 %v264
    %v266 = vand.u32 %v82, 4294901760
    %v267 = vsub.f32 %v82, %v266
    %268 = vmatpush.msra.mxu0 %v267
    %v269 = vand.u32 %v81, 4294901760
    %v270 = vsub.f32 %v81, %v269
    %271 = vmatpush.msra.mxu0 %v270
    %v272 = vand.u32 %v80, 4294901760
    %v273 = vsub.f32 %v80, %v272
    %274 = vmatpush.msra.mxu0 %v273
    %v275 = vand.u32 %v79, 4294901760
    %v276 = vsub.f32 %v79, %v275
    %277 = vmatpush.msra.mxu0 %v276
    %v278 = vand.u32 %v78, 4294901760
    %v279 = vsub.f32 %v78, %v278
    %280 = vmatpush.msra.mxu0 %v279
    %v281 = vand.u32 %v77, 4294901760
    %v282 = vsub.f32 %v77, %v281
    %283 = vmatpush.msra.mxu0 %v282
    %v284 = vand.u32 %v76, 4294901760
    %v285 = vsub.f32 %v76, %v284
    %286 = vmatmul.f32.gmra.mxu0 %v285
    %v287 = vpop.f32.mrf.mxu0
    %v288 = vadd.f32 %v234, %v287
    %289 = vdwg.mxu0
    %v290 = vand.u32 %v92, 4294901760
    %291 = vmatpush.msra.mxu0 %v290
    %v292 = vand.u32 %v91, 4294901760
    %293 = vmatpush.msra.mxu0 %v292
    %v294 = vand.u32 %v90, 4294901760
    %295 = vmatpush.msra.mxu0 %v294
    %v296 = vand.u32 %v89, 4294901760
    %297 = vmatpush.msra.mxu0 %v296
    %v298 = vand.u32 %v88, 4294901760
    %299 = vmatpush.msra.mxu0 %v298
    %v300 = vand.u32 %v87, 4294901760
    %301 = vmatpush.msra.mxu0 %v300
    %v302 = vand.u32 %v86, 4294901760
    %303 = vmatpush.msra.mxu0 %v302
    %v304 = vand.u32 %v85, 4294901760
    %305 = vmatpush.msra.mxu0 %v304
    %v306 = vand.u32 %v84, 4294901760
    %307 = vmatpush.msra.mxu0 %v306
    %v308 = vand.u32 %v83, 4294901760
    %309 = vmatpush.msra.mxu0 %v308
    %v310 = vand.u32 %v82, 4294901760
    %311 = vmatpush.msra.mxu0 %v310
    %v312 = vand.u32 %v81, 4294901760
    %313 = vmatpush.msra.mxu0 %v312
    %v314 = vand.u32 %v80, 4294901760
    %315 = vmatpush.msra.mxu0 %v314
    %v316 = vand.u32 %v79, 4294901760
    %317 = vmatpush.msra.mxu0 %v316
    %v318 = vand.u32 %v78, 4294901760
    %319 = vmatpush.msra.mxu0 %v318
    %v320 = vand.u32 %v77, 4294901760
    %321 = vmatpush.msra.mxu0 %v320
    %v322 = vand.u32 %v76, 4294901760
    %v323 = vsub.f32 %v76, %v322
    %v324 = vand.u32 %v323, 4294901760
    %325 = vmatmul.f32.gmra.mxu0 %v324
    %v326 = vpop.f32.mrf.mxu0
    %v327 = vadd.f32 %v288, %v326
    %328 = vdwg.mxu0
    %v329 = vand.u32 %v92, 4294901760
    %v330 = vsub.f32 %v92, %v329
    %v331 = vand.u32 %v330, 4294901760
    %332 = vmatpush.msra.mxu0 %v331
    %v333 = vand.u32 %v91, 4294901760
    %v334 = vsub.f32 %v91, %v333
    %v335 = vand.u32 %v334, 4294901760
    %336 = vmatpush.msra.mxu0 %v335
    %v337 = vand.u32 %v90, 4294901760
    %v338 = vsub.f32 %v90, %v337
    %v339 = vand.u32 %v338, 4294901760
    %340 = vmatpush.msra.mxu0 %v339
    %v341 = vand.u32 %v89, 4294901760
    %v342 = vsub.f32 %v89, %v341
    %v343 = vand.u32 %v342, 4294901760
    %344 = vmatpush.msra.mxu0 %v343
    %v345 = vand.u32 %v88, 4294901760
    %v346 = vsub.f32 %v88, %v345
    %v347 = vand.u32 %v346, 4294901760
    %348 = vmatpush.msra.mxu0 %v347
    %v349 = vand.u32 %v87, 4294901760
    %v350 = vsub.f32 %v87, %v349
    %v351 = vand.u32 %v350, 4294901760
    %352 = vmatpush.msra.mxu0 %v351
    %v353 = vand.u32 %v86, 4294901760
    %v354 = vsub.f32 %v86, %v353
    %v355 = vand.u32 %v354, 4294901760
    %356 = vmatpush.msra.mxu0 %v355
    %v357 = vand.u32 %v85, 4294901760
    %v358 = vsub.f32 %v85, %v357
    %v359 = vand.u32 %v358, 4294901760
    %360 = vmatpush.msra.mxu0 %v359
    %v361 = vand.u32 %v84, 4294901760
    %v362 = vsub.f32 %v84, %v361
    %v363 = vand.u32 %v362, 4294901760
    %364 = vmatpush.msra.mxu0 %v363
    %v365 = vand.u32 %v83, 4294901760
    %v366 = vsub.f32 %v83, %v365
    %v367 = vand.u32 %v366, 4294901760
    %368 = vmatpush.msra.mxu0 %v367
    %v369 = vand.u32 %v82, 4294901760
    %v370 = vsub.f32 %v82, %v369
    %v371 = vand.u32 %v370, 4294901760
    %372 = vmatpush.msra.mxu0 %v371
    %v373 = vand.u32 %v81, 4294901760
    %v374 = vsub.f32 %v81, %v373
    %v375 = vand.u32 %v374, 4294901760
    %376 = vmatpush.msra.mxu0 %v375
    %v377 = vand.u32 %v80, 4294901760
    %v378 = vsub.f32 %v80, %v377
    %v379 = vand.u32 %v378, 4294901760
    %380 = vmatpush.msra.mxu0 %v379
    %v381 = vand.u32 %v79, 4294901760
    %v382 = vsub.f32 %v79, %v381
    %v383 = vand.u32 %v382, 4294901760
    %384 = vmatpush.msra.mxu0 %v383
    %v385 = vand.u32 %v78, 4294901760
    %v386 = vsub.f32 %v78, %v385
    %v387 = vand.u32 %v386, 4294901760
    %388 = vmatpush.msra.mxu0 %v387
    %v389 = vand.u32 %v77, 4294901760
    %v390 = vsub.f32 %v77, %v389
    %v391 = vand.u32 %v390, 4294901760
    %392 = vmatpush.msra.mxu0 %v391
    %v393 = vand.u32 %v76, 4294901760
    %394 = vmatmul.f32.gmra.mxu0 %v393
    %v395 = vpop.f32.mrf.mxu0
    %v396 = vadd.f32 %v327, %v395
    %397 = vdwg.mxu0
    %v398 = vand.u32 %v92, 4294901760
    %399 = vmatpush.msra.mxu0 %v398
    %v400 = vand.u32 %v91, 4294901760
    %401 = vmatpush.msra.mxu0 %v400
    %v402 = vand.u32 %v90, 4294901760
    %403 = vmatpush.msra.mxu0 %v402
    %v404 = vand.u32 %v89, 4294901760
    %405 = vmatpush.msra.mxu0 %v404
    %v406 = vand.u32 %v88, 4294901760
    %407 = vmatpush.msra.mxu0 %v406
    %v408 = vand.u32 %v87, 4294901760
    %409 = vmatpush.msra.mxu0 %v408
    %v410 = vand.u32 %v86, 4294901760
    %411 = vmatpush.msra.mxu0 %v410
    %v412 = vand.u32 %v85, 4294901760
    %413 = vmatpush.msra.mxu0 %v412
    %v414 = vand.u32 %v84, 4294901760
    %415 = vmatpush.msra.mxu0 %v414
    %v416 = vand.u32 %v83, 4294901760
    %417 = vmatpush.msra.mxu0 %v416
    %v418 = vand.u32 %v82, 4294901760
    %419 = vmatpush.msra.mxu0 %v418
    %v420 = vand.u32 %v81, 4294901760
    %421 = vmatpush.msra.mxu0 %v420
    %v422 = vand.u32 %v80, 4294901760
    %423 = vmatpush.msra.mxu0 %v422
    %v424 = vand.u32 %v79, 4294901760
    %425 = vmatpush.msra.mxu0 %v424
    %v426 = vand.u32 %v78, 4294901760
    %427 = vmatpush.msra.mxu0 %v426
    %v428 = vand.u32 %v77, 4294901760
    %429 = vmatpush.msra.mxu0 %v428
    %v430 = vand.u32 %v76, 4294901760
    %431 = vmatmul.f32.gmra.mxu0 %v430
    %v432 = vpop.f32.mrf.mxu0
    %v433 = vadd.f32 %v396, %v432
    %434 = vdwg.mxu0
    %v435 = vmax.f32 %v433, 0.0
    %v436 = vld [vmem:[#allocation5] sm:$0xff]
    %s437 = scalar_lea.vmem [#allocation7], 128
    %v438 = vld [vmem:[%s437] sm:$0xff]
    %v439 = vld [vmem:[%s437 + $0x8] sm:$0xff]
    %v440 = vld [vmem:[%s437 + $0x10] sm:$0xff]
    %v441 = vld [vmem:[%s437 + $0x18] sm:$0xff]
    %v442 = vld [vmem:[%s437 + $0x20] sm:$0xff]
    %v443 = vld [vmem:[%s437 + $0x28] sm:$0xff]
    %v444 = vld [vmem:[%s437 + $0x30] sm:$0xff]
    %v445 = vld [vmem:[%s437 + $0x38] sm:$0xff]
    %v446 = vld [vmem:[%s437 + $0x40] sm:$0xff]
    %v447 = vld [vmem:[%s437 + $0x48] sm:$0xff]
    %v448 = vld [vmem:[%s437 + $0x50] sm:$0xff]
    %v449 = vld [vmem:[%s437 + $0x58] sm:$0xff]
    %v450 = vld [vmem:[%s437 + $0x60] sm:$0xff]
    %v451 = vld [vmem:[%s437 + $0x68] sm:$0xff]
    %v452 = vld [vmem:[%s437 + $0x70] sm:$0xff]
    %v453 = vld [vmem:[%s437 + $0x78] sm:$0xff]
    %v454 = vperm.slane %v75, 1
    %v455 = vand.u32 %v453, 4294901760
    %456 = vmatpush.msra.mxu0 %v455
    %v457 = vand.u32 %v452, 4294901760
    %458 = vmatpush.msra.mxu0 %v457
    %v459 = vand.u32 %v451, 4294901760
    %460 = vmatpush.msra.mxu0 %v459
    %v461 = vand.u32 %v450, 4294901760
    %462 = vmatpush.msra.mxu0 %v461
    %v463 = vand.u32 %v449, 4294901760
    %464 = vmatpush.msra.mxu0 %v463
    %v465 = vand.u32 %v448, 4294901760
    %466 = vmatpush.msra.mxu0 %v465
    %v467 = vand.u32 %v447, 4294901760
    %468 = vmatpush.msra.mxu0 %v467
    %v469 = vand.u32 %v446, 4294901760
    %470 = vmatpush.msra.mxu0 %v469
    %v471 = vand.u32 %v445, 4294901760
    %472 = vmatpush.msra.mxu0 %v471
    %v473 = vand.u32 %v444, 4294901760
    %474 = vmatpush.msra.mxu0 %v473
    %v475 = vand.u32 %v443, 4294901760
    %476 = vmatpush.msra.mxu0 %v475
    %v477 = vand.u32 %v442, 4294901760
    %478 = vmatpush.msra.mxu0 %v477
    %v479 = vand.u32 %v441, 4294901760
    %480 = vmatpush.msra.mxu0 %v479
    %v481 = vand.u32 %v440, 4294901760
    %482 = vmatpush.msra.mxu0 %v481
    %v483 = vand.u32 %v439, 4294901760
    %484 = vmatpush.msra.mxu0 %v483
    %v485 = vand.u32 %v438, 4294901760
    %486 = vmatpush.msra.mxu0 %v485
    %v487 = vand.u32 %v436, 4294901760
    %v488 = vsub.f32 %v436, %v487
    %v489 = vand.u32 %v488, 4294901760
    %v490 = vsub.f32 %v488, %v489
    %v491 = vand.u32 %v490, 4294901760
    %492 = vmatmul.f32.gmra.mxu0 %v491
    %v493 = vpop.f32.mrf.mxu0
    %v494 = vadd.f32 %v454, %v493
    %495 = vdwg.mxu0
    %v496 = vand.u32 %v453, 4294901760
    %v497 = vsub.f32 %v453, %v496
    %v498 = vand.u32 %v497, 4294901760
    %v499 = vsub.f32 %v497, %v498
    %v500 = vand.u32 %v499, 4294901760
    %501 = vmatpush.msra.mxu0 %v500
    %v502 = vand.u32 %v452, 4294901760
    %v503 = vsub.f32 %v452, %v502
    %v504 = vand.u32 %v503, 4294901760
    %v505 = vsub.f32 %v503, %v504
    %v506 = vand.u32 %v505, 4294901760
    %507 = vmatpush.msra.mxu0 %v506
    %v508 = vand.u32 %v451, 4294901760
    %v509 = vsub.f32 %v451, %v508
    %v510 = vand.u32 %v509, 4294901760
    %v511 = vsub.f32 %v509, %v510
    %v512 = vand.u32 %v511, 4294901760
    %513 = vmatpush.msra.mxu0 %v512
    %v514 = vand.u32 %v450, 4294901760
    %v515 = vsub.f32 %v450, %v514
    %v516 = vand.u32 %v515, 4294901760
    %v517 = vsub.f32 %v515, %v516
    %v518 = vand.u32 %v517, 4294901760
    %519 = vmatpush.msra.mxu0 %v518
    %v520 = vand.u32 %v449, 4294901760
    %v521 = vsub.f32 %v449, %v520
    %v522 = vand.u32 %v521, 4294901760
    %v523 = vsub.f32 %v521, %v522
    %v524 = vand.u32 %v523, 4294901760
    %525 = vmatpush.msra.mxu0 %v524
    %v526 = vand.u32 %v448, 4294901760
    %v527 = vsub.f32 %v448, %v526
    %v528 = vand.u32 %v527, 4294901760
    %v529 = vsub.f32 %v527, %v528
    %v530 = vand.u32 %v529, 4294901760
    %531 = vmatpush.msra.mxu0 %v530
    %v532 = vand.u32 %v447, 4294901760
    %v533 = vsub.f32 %v447, %v532
    %v534 = vand.u32 %v533, 4294901760
    %v535 = vsub.f32 %v533, %v534
    %v536 = vand.u32 %v535, 4294901760
    %537 = vmatpush.msra.mxu0 %v536
    %v538 = vand.u32 %v446, 4294901760
    %v539 = vsub.f32 %v446, %v538
    %v540 = vand.u32 %v539, 4294901760
    %v541 = vsub.f32 %v539, %v540
    %v542 = vand.u32 %v541, 4294901760
    %543 = vmatpush.msra.mxu0 %v542
    %v544 = vand.u32 %v445, 4294901760
    %v545 = vsub.f32 %v445, %v544
    %v546 = vand.u32 %v545, 4294901760
    %v547 = vsub.f32 %v545, %v546
    %v548 = vand.u32 %v547, 4294901760
    %549 = vmatpush.msra.mxu0 %v548
    %v550 = vand.u32 %v444, 4294901760
    %v551 = vsub.f32 %v444, %v550
    %v552 = vand.u32 %v551, 4294901760
    %v553 = vsub.f32 %v551, %v552
    %v554 = vand.u32 %v553, 4294901760
    %555 = vmatpush.msra.mxu0 %v554
    %v556 = vand.u32 %v443, 4294901760
    %v557 = vsub.f32 %v443, %v556
    %v558 = vand.u32 %v557, 4294901760
    %v559 = vsub.f32 %v557, %v558
    %v560 = vand.u32 %v559, 4294901760
    %561 = vmatpush.msra.mxu0 %v560
    %v562 = vand.u32 %v442, 4294901760
    %v563 = vsub.f32 %v442, %v562
    %v564 = vand.u32 %v563, 4294901760
    %v565 = vsub.f32 %v563, %v564
    %v566 = vand.u32 %v565, 4294901760
    %567 = vmatpush.msra.mxu0 %v566
    %v568 = vand.u32 %v441, 4294901760
    %v569 = vsub.f32 %v441, %v568
    %v570 = vand.u32 %v569, 4294901760
    %v571 = vsub.f32 %v569, %v570
    %v572 = vand.u32 %v571, 4294901760
    %573 = vmatpush.msra.mxu0 %v572
    %v574 = vand.u32 %v440, 4294901760
    %v575 = vsub.f32 %v440, %v574
    %v576 = vand.u32 %v575, 4294901760
    %v577 = vsub.f32 %v575, %v576
    %v578 = vand.u32 %v577, 4294901760
    %579 = vmatpush.msra.mxu0 %v578
    %v580 = vand.u32 %v439, 4294901760
    %v581 = vsub.f32 %v439, %v580
    %v582 = vand.u32 %v581, 4294901760
    %v583 = vsub.f32 %v581, %v582
    %v584 = vand.u32 %v583, 4294901760
    %585 = vmatpush.msra.mxu0 %v584
    %v586 = vand.u32 %v438, 4294901760
    %v587 = vsub.f32 %v438, %v586
    %v588 = vand.u32 %v587, 4294901760
    %v589 = vsub.f32 %v587, %v588
    %v590 = vand.u32 %v589, 4294901760
    %591 = vmatpush.msra.mxu0 %v590
    %v592 = vand.u32 %v436, 4294901760
    %593 = vmatmul.f32.gmra.mxu0 %v592
    %v594 = vpop.f32.mrf.mxu0
    %v595 = vadd.f32 %v494, %v594
    %596 = vdwg.mxu0
    %v597 = vand.u32 %v453, 4294901760
    %v598 = vsub.f32 %v453, %v597
    %599 = vmatpush.msra.mxu0 %v598
    %v600 = vand.u32 %v452, 4294901760
    %v601 = vsub.f32 %v452, %v600
    %602 = vmatpush.msra.mxu0 %v601
    %v603 = vand.u32 %v451, 4294901760
    %v604 = vsub.f32 %v451, %v603
    %605 = vmatpush.msra.mxu0 %v604
    %v606 = vand.u32 %v450, 4294901760
    %v607 = vsub.f32 %v450, %v606
    %608 = vmatpush.msra.mxu0 %v607
    %v609 = vand.u32 %v449, 4294901760
    %v610 = vsub.f32 %v449, %v609
    %611 = vmatpush.msra.mxu0 %v610
    %v612 = vand.u32 %v448, 4294901760
    %v613 = vsub.f32 %v448, %v612
    %614 = vmatpush.msra.mxu0 %v613
    %v615 = vand.u32 %v447, 4294901760
    %v616 = vsub.f32 %v447, %v615
    %617 = vmatpush.msra.mxu0 %v616
    %v618 = vand.u32 %v446, 4294901760
    %v619 = vsub.f32 %v446, %v618
    %620 = vmatpush.msra.mxu0 %v619
    %v621 = vand.u32 %v445, 4294901760
    %v622 = vsub.f32 %v445, %v621
    %623 = vmatpush.msra.mxu0 %v622
    %v624 = vand.u32 %v444, 4294901760
    %v625 = vsub.f32 %v444, %v624
    %626 = vmatpush.msra.mxu0 %v625
    %v627 = vand.u32 %v443, 4294901760
    %v628 = vsub.f32 %v443, %v627
    %629 = vmatpush.msra.mxu0 %v628
    %v630 = vand.u32 %v442, 4294901760
    %v631 = vsub.f32 %v442, %v630
    %632 = vmatpush.msra.mxu0 %v631
    %v633 = vand.u32 %v441, 4294901760
    %v634 = vsub.f32 %v441, %v633
    %635 = vmatpush.msra.mxu0 %v634
    %v636 = vand.u32 %v440, 4294901760
    %v637 = vsub.f32 %v440, %v636
    %638 = vmatpush.msra.mxu0 %v637
    %v639 = vand.u32 %v439, 4294901760
    %v640 = vsub.f32 %v439, %v639
    %641 = vmatpush.msra.mxu0 %v640
    %v642 = vand.u32 %v438, 4294901760
    %v643 = vsub.f32 %v438, %v642
    %644 = vmatpush.msra.mxu0 %v643
    %v645 = vand.u32 %v436, 4294901760
    %v646 = vsub.f32 %v436, %v645
    %647 = vmatmul.f32.gmra.mxu0 %v646
    %v648 = vpop.f32.mrf.mxu0
    %v649 = vadd.f32 %v595, %v648
    %650 = vdwg.mxu0
    %v651 = vand.u32 %v453, 4294901760
    %652 = vmatpush.msra.mxu0 %v651
    %v653 = vand.u32 %v452, 4294901760
    %654 = vmatpush.msra.mxu0 %v653
    %v655 = vand.u32 %v451, 4294901760
    %656 = vmatpush.msra.mxu0 %v655
    %v657 = vand.u32 %v450, 4294901760
    %658 = vmatpush.msra.mxu0 %v657
    %v659 = vand.u32 %v449, 4294901760
    %660 = vmatpush.msra.mxu0 %v659
    %v661 = vand.u32 %v448, 4294901760
    %662 = vmatpush.msra.mxu0 %v661
    %v663 = vand.u32 %v447, 4294901760
    %664 = vmatpush.msra.mxu0 %v663
    %v665 = vand.u32 %v446, 4294901760
    %666 = vmatpush.msra.mxu0 %v665
    %v667 = vand.u32 %v445, 4294901760
    %668 = vmatpush.msra.mxu0 %v667
    %v669 = vand.u32 %v444, 4294901760
    %670 = vmatpush.msra.mxu0 %v669
    %v671 = vand.u32 %v443, 4294901760
    %672 = vmatpush.msra.mxu0 %v671
    %v673 = vand.u32 %v442, 4294901760
    %674 = vmatpush.msra.mxu0 %v673
    %v675 = vand.u32 %v441, 4294901760
    %676 = vmatpush.msra.mxu0 %v675
    %v677 = vand.u32 %v440, 4294901760
    %678 = vmatpush.msra.mxu0 %v677
    %v679 = vand.u32 %v439, 4294901760
    %680 = vmatpush.msra.mxu0 %v679
    %v681 = vand.u32 %v438, 4294901760
    %682 = vmatpush.msra.mxu0 %v681
    %v683 = vand.u32 %v436, 4294901760
    %v684 = vsub.f32 %v436, %v683
    %v685 = vand.u32 %v684, 4294901760
    %686 = vmatmul.f32.gmra.mxu0 %v685
    %v687 = vpop.f32.mrf.mxu0
    %v688 = vadd.f32 %v649, %v687
    %689 = vdwg.mxu0
    %v690 = vand.u32 %v453, 4294901760
    %v691 = vsub.f32 %v453, %v690
    %v692 = vand.u32 %v691, 4294901760
    %693 = vmatpush.msra.mxu0 %v692
    %v694 = vand.u32 %v452, 4294901760
    %v695 = vsub.f32 %v452, %v694
    %v696 = vand.u32 %v695, 4294901760
    %697 = vmatpush.msra.mxu0 %v696
    %v698 = vand.u32 %v451, 4294901760
    %v699 = vsub.f32 %v451, %v698
    %v700 = vand.u32 %v699, 4294901760
    %701 = vmatpush.msra.mxu0 %v700
    %v702 = vand.u32 %v450, 4294901760
    %v703 = vsub.f32 %v450, %v702
    %v704 = vand.u32 %v703, 4294901760
    %705 = vmatpush.msra.mxu0 %v704
    %v706 = vand.u32 %v449, 4294901760
    %v707 = vsub.f32 %v449, %v706
    %v708 = vand.u32 %v707, 4294901760
    %709 = vmatpush.msra.mxu0 %v708
    %v710 = vand.u32 %v448, 4294901760
    %v711 = vsub.f32 %v448, %v710
    %v712 = vand.u32 %v711, 4294901760
    %713 = vmatpush.msra.mxu0 %v712
    %v714 = vand.u32 %v447, 4294901760
    %v715 = vsub.f32 %v447, %v714
    %v716 = vand.u32 %v715, 4294901760
    %717 = vmatpush.msra.mxu0 %v716
    %v718 = vand.u32 %v446, 4294901760
    %v719 = vsub.f32 %v446, %v718
    %v720 = vand.u32 %v719, 4294901760
    %721 = vmatpush.msra.mxu0 %v720
    %v722 = vand.u32 %v445, 4294901760
    %v723 = vsub.f32 %v445, %v722
    %v724 = vand.u32 %v723, 4294901760
    %725 = vmatpush.msra.mxu0 %v724
    %v726 = vand.u32 %v444, 4294901760
    %v727 = vsub.f32 %v444, %v726
    %v728 = vand.u32 %v727, 4294901760
    %729 = vmatpush.msra.mxu0 %v728
    %v730 = vand.u32 %v443, 4294901760
    %v731 = vsub.f32 %v443, %v730
    %v732 = vand.u32 %v731, 4294901760
    %733 = vmatpush.msra.mxu0 %v732
    %v734 = vand.u32 %v442, 4294901760
    %v735 = vsub.f32 %v442, %v734
    %v736 = vand.u32 %v735, 4294901760
    %737 = vmatpush.msra.mxu0 %v736
    %v738 = vand.u32 %v441, 4294901760
    %v739 = vsub.f32 %v441, %v738
    %v740 = vand.u32 %v739, 4294901760
    %741 = vmatpush.msra.mxu0 %v740
    %v742 = vand.u32 %v440, 4294901760
    %v743 = vsub.f32 %v440, %v742
    %v744 = vand.u32 %v743, 4294901760
    %745 = vmatpush.msra.mxu0 %v744
    %v746 = vand.u32 %v439, 4294901760
    %v747 = vsub.f32 %v439, %v746
    %v748 = vand.u32 %v747, 4294901760
    %749 = vmatpush.msra.mxu0 %v748
    %v750 = vand.u32 %v438, 4294901760
    %v751 = vsub.f32 %v438, %v750
    %v752 = vand.u32 %v751, 4294901760
    %753 = vmatpush.msra.mxu0 %v752
    %v754 = vand.u32 %v436, 4294901760
    %755 = vmatmul.f32.gmra.mxu0 %v754
    %v756 = vpop.f32.mrf.mxu0
    %v757 = vadd.f32 %v688, %v756
    %758 = vdwg.mxu0
    %v759 = vand.u32 %v453, 4294901760
    %760 = vmatpush.msra.mxu0 %v759
    %v761 = vand.u32 %v452, 4294901760
    %762 = vmatpush.msra.mxu0 %v761
    %v763 = vand.u32 %v451, 4294901760
    %764 = vmatpush.msra.mxu0 %v763
    %v765 = vand.u32 %v450, 4294901760
    %766 = vmatpush.msra.mxu0 %v765
    %v767 = vand.u32 %v449, 4294901760
    %768 = vmatpush.msra.mxu0 %v767
    %v769 = vand.u32 %v448, 4294901760
    %770 = vmatpush.msra.mxu0 %v769
    %v771 = vand.u32 %v447, 4294901760
    %772 = vmatpush.msra.mxu0 %v771
    %v773 = vand.u32 %v446, 4294901760
    %774 = vmatpush.msra.mxu0 %v773
    %v775 = vand.u32 %v445, 4294901760
    %776 = vmatpush.msra.mxu0 %v775
    %v777 = vand.u32 %v444, 4294901760
    %778 = vmatpush.msra.mxu0 %v777
    %v779 = vand.u32 %v443, 4294901760
    %780 = vmatpush.msra.mxu0 %v779
    %v781 = vand.u32 %v442, 4294901760
    %782 = vmatpush.msra.mxu0 %v781
    %v783 = vand.u32 %v441, 4294901760
    %784 = vmatpush.msra.mxu0 %v783
    %v785 = vand.u32 %v440, 4294901760
    %786 = vmatpush.msra.mxu0 %v785
    %v787 = vand.u32 %v439, 4294901760
    %788 = vmatpush.msra.mxu0 %v787
    %v789 = vand.u32 %v438, 4294901760
    %790 = vmatpush.msra.mxu0 %v789
    %v791 = vand.u32 %v436, 4294901760
    %792 = vmatmul.f32.gmra.mxu0 %v791
    %v793 = vpop.f32.mrf.mxu0
    %v794 = vadd.f32 %v757, %v793
    %795 = vdwg.mxu0
    %v796 = vmax.f32 %v794, 0.0
    %s797 = scalar_lea.vmem [#allocation7], 256
    %v798 = vld [vmem:[%s797] sm:$0xff]
    %v799 = vld [vmem:[%s797 + $0x8] sm:$0xff]
    %v800 = vld [vmem:[%s797 + $0x10] sm:$0xff]
    %v801 = vld [vmem:[%s797 + $0x18] sm:$0xff]
    %v802 = vld [vmem:[%s797 + $0x20] sm:$0xff]
    %v803 = vld [vmem:[%s797 + $0x28] sm:$0xff]
    %v804 = vld [vmem:[%s797 + $0x30] sm:$0xff]
    %v805 = vld [vmem:[%s797 + $0x38] sm:$0xff]
    %v806 = vld [vmem:[%s797 + $0x40] sm:$0xff]
    %v807 = vld [vmem:[%s797 + $0x48] sm:$0xff]
    %v808 = vld [vmem:[%s797 + $0x50] sm:$0xff]
    %v809 = vld [vmem:[%s797 + $0x58] sm:$0xff]
    %v810 = vld [vmem:[%s797 + $0x60] sm:$0xff]
    %v811 = vld [vmem:[%s797 + $0x68] sm:$0xff]
    %v812 = vld [vmem:[%s797 + $0x70] sm:$0xff]
    %v813 = vld [vmem:[%s797 + $0x78] sm:$0xff]
    %s814 = scalar_lea.vmem [#allocation7], 384
    %v815 = vld [vmem:[%s814] sm:$0xff]
    %v816 = vld [vmem:[%s814 + $0x8] sm:$0xff]
    %v817 = vld [vmem:[%s814 + $0x10] sm:$0xff]
    %v818 = vld [vmem:[%s814 + $0x18] sm:$0xff]
    %v819 = vld [vmem:[%s814 + $0x20] sm:$0xff]
    %v820 = vld [vmem:[%s814 + $0x28] sm:$0xff]
    %v821 = vld [vmem:[%s814 + $0x30] sm:$0xff]
    %v822 = vld [vmem:[%s814 + $0x38] sm:$0xff]
    %v823 = vld [vmem:[%s814 + $0x40] sm:$0xff]
    %v824 = vld [vmem:[%s814 + $0x48] sm:$0xff]
    %v825 = vld [vmem:[%s814 + $0x50] sm:$0xff]
    %v826 = vld [vmem:[%s814 + $0x58] sm:$0xff]
    %v827 = vld [vmem:[%s814 + $0x60] sm:$0xff]
    %v828 = vld [vmem:[%s814 + $0x68] sm:$0xff]
    %v829 = vld [vmem:[%s814 + $0x70] sm:$0xff]
    %v830 = vld [vmem:[%s814 + $0x78] sm:$0xff]
    %v831 = vand.u32 %v830, 4294901760
    %832 = vmatpush.msra.mxu0 %v831
    %v833 = vand.u32 %v829, 4294901760
    %834 = vmatpush.msra.mxu0 %v833
    %v835 = vand.u32 %v828, 4294901760
    %836 = vmatpush.msra.mxu0 %v835
    %v837 = vand.u32 %v827, 4294901760
    %838 = vmatpush.msra.mxu0 %v837
    %v839 = vand.u32 %v826, 4294901760
    %840 = vmatpush.msra.mxu0 %v839
    %v841 = vand.u32 %v825, 4294901760
    %842 = vmatpush.msra.mxu0 %v841
    %v843 = vand.u32 %v824, 4294901760
    %844 = vmatpush.msra.mxu0 %v843
    %v845 = vand.u32 %v823, 4294901760
    %846 = vmatpush.msra.mxu0 %v845
    %v847 = vand.u32 %v822, 4294901760
    %848 = vmatpush.msra.mxu0 %v847
    %v849 = vand.u32 %v821, 4294901760
    %850 = vmatpush.msra.mxu0 %v849
    %v851 = vand.u32 %v820, 4294901760
    %852 = vmatpush.msra.mxu0 %v851
    %v853 = vand.u32 %v819, 4294901760
    %854 = vmatpush.msra.mxu0 %v853
    %v855 = vand.u32 %v818, 4294901760
    %856 = vmatpush.msra.mxu0 %v855
    %v857 = vand.u32 %v817, 4294901760
    %858 = vmatpush.msra.mxu0 %v857
    %v859 = vand.u32 %v816, 4294901760
    %860 = vmatpush.msra.mxu0 %v859
    %v861 = vand.u32 %v815, 4294901760
    %862 = vmatpush.msra.mxu0 %v861
    %v863 = vand.u32 %v796, 4294901760
    %v864 = vsub.f32 %v796, %v863
    %v865 = vand.u32 %v864, 4294901760
    %v866 = vsub.f32 %v864, %v865
    %v867 = vand.u32 %v866, 4294901760
    %868 = vmatmul.f32.gmra.mxu0 %v867
    %v869 = vpop.f32.mrf.mxu0
    %v870 = vadd.f32 0.0, %v869
    %871 = vdwg.mxu0
    %v872 = vand.u32 %v830, 4294901760
    %v873 = vsub.f32 %v830, %v872
    %v874 = vand.u32 %v873, 4294901760
    %v875 = vsub.f32 %v873, %v874
    %v876 = vand.u32 %v875, 4294901760
    %877 = vmatpush.msra.mxu0 %v876
    %v878 = vand.u32 %v829, 4294901760
    %v879 = vsub.f32 %v829, %v878
    %v880 = vand.u32 %v879, 4294901760
    %v881 = vsub.f32 %v879, %v880
    %v882 = vand.u32 %v881, 4294901760
    %883 = vmatpush.msra.mxu0 %v882
    %v884 = vand.u32 %v828, 4294901760
    %v885 = vsub.f32 %v828, %v884
    %v886 = vand.u32 %v885, 4294901760
    %v887 = vsub.f32 %v885, %v886
    %v888 = vand.u32 %v887, 4294901760
    %889 = vmatpush.msra.mxu0 %v888
    %v890 = vand.u32 %v827, 4294901760
    %v891 = vsub.f32 %v827, %v890
    %v892 = vand.u32 %v891, 4294901760
    %v893 = vsub.f32 %v891, %v892
    %v894 = vand.u32 %v893, 4294901760
    %895 = vmatpush.msra.mxu0 %v894
    %v896 = vand.u32 %v826, 4294901760
    %v897 = vsub.f32 %v826, %v896
    %v898 = vand.u32 %v897, 4294901760
    %v899 = vsub.f32 %v897, %v898
    %v900 = vand.u32 %v899, 4294901760
    %901 = vmatpush.msra.mxu0 %v900
    %v902 = vand.u32 %v825, 4294901760
    %v903 = vsub.f32 %v825, %v902
    %v904 = vand.u32 %v903, 4294901760
    %v905 = vsub.f32 %v903, %v904
    %v906 = vand.u32 %v905, 4294901760
    %907 = vmatpush.msra.mxu0 %v906
    %v908 = vand.u32 %v824, 4294901760
    %v909 = vsub.f32 %v824, %v908
    %v910 = vand.u32 %v909, 4294901760
    %v911 = vsub.f32 %v909, %v910
    %v912 = vand.u32 %v911, 4294901760
    %913 = vmatpush.msra.mxu0 %v912
    %v914 = vand.u32 %v823, 4294901760
    %v915 = vsub.f32 %v823, %v914
    %v916 = vand.u32 %v915, 4294901760
    %v917 = vsub.f32 %v915, %v916
    %v918 = vand.u32 %v917, 4294901760
    %919 = vmatpush.msra.mxu0 %v918
    %v920 = vand.u32 %v822, 4294901760
    %v921 = vsub.f32 %v822, %v920
    %v922 = vand.u32 %v921, 4294901760
    %v923 = vsub.f32 %v921, %v922
    %v924 = vand.u32 %v923, 4294901760
    %925 = vmatpush.msra.mxu0 %v924
    %v926 = vand.u32 %v821, 4294901760
    %v927 = vsub.f32 %v821, %v926
    %v928 = vand.u32 %v927, 4294901760
    %v929 = vsub.f32 %v927, %v928
    %v930 = vand.u32 %v929, 4294901760
    %931 = vmatpush.msra.mxu0 %v930
    %v932 = vand.u32 %v820, 4294901760
    %v933 = vsub.f32 %v820, %v932
    %v934 = vand.u32 %v933, 4294901760
    %v935 = vsub.f32 %v933, %v934
    %v936 = vand.u32 %v935, 4294901760
    %937 = vmatpush.msra.mxu0 %v936
    %v938 = vand.u32 %v819, 4294901760
    %v939 = vsub.f32 %v819, %v938
    %v940 = vand.u32 %v939, 4294901760
    %v941 = vsub.f32 %v939, %v940
    %v942 = vand.u32 %v941, 4294901760
    %943 = vmatpush.msra.mxu0 %v942
    %v944 = vand.u32 %v818, 4294901760
    %v945 = vsub.f32 %v818, %v944
    %v946 = vand.u32 %v945, 4294901760
    %v947 = vsub.f32 %v945, %v946
    %v948 = vand.u32 %v947, 4294901760
    %949 = vmatpush.msra.mxu0 %v948
    %v950 = vand.u32 %v817, 4294901760
    %v951 = vsub.f32 %v817, %v950
    %v952 = vand.u32 %v951, 4294901760
    %v953 = vsub.f32 %v951, %v952
    %v954 = vand.u32 %v953, 4294901760
    %955 = vmatpush.msra.mxu0 %v954
    %v956 = vand.u32 %v816, 4294901760
    %v957 = vsub.f32 %v816, %v956
    %v958 = vand.u32 %v957, 4294901760
    %v959 = vsub.f32 %v957, %v958
    %v960 = vand.u32 %v959, 4294901760
    %961 = vmatpush.msra.mxu0 %v960
    %v962 = vand.u32 %v815, 4294901760
    %v963 = vsub.f32 %v815, %v962
    %v964 = vand.u32 %v963, 4294901760
    %v965 = vsub.f32 %v963, %v964
    %v966 = vand.u32 %v965, 4294901760
    %967 = vmatpush.msra.mxu0 %v966
    %v968 = vand.u32 %v796, 4294901760
    %969 = vmatmul.f32.gmra.mxu0 %v968
    %v970 = vpop.f32.mrf.mxu0
    %v971 = vadd.f32 %v870, %v970
    %972 = vdwg.mxu0
    %v973 = vand.u32 %v830, 4294901760
    %v974 = vsub.f32 %v830, %v973
    %975 = vmatpush.msra.mxu0 %v974
    %v976 = vand.u32 %v829, 4294901760
    %v977 = vsub.f32 %v829, %v976
    %978 = vmatpush.msra.mxu0 %v977
    %v979 = vand.u32 %v828, 4294901760
    %v980 = vsub.f32 %v828, %v979
    %981 = vmatpush.msra.mxu0 %v980
    %v982 = vand.u32 %v827, 4294901760
    %v983 = vsub.f32 %v827, %v982
    %984 = vmatpush.msra.mxu0 %v983
    %v985 = vand.u32 %v826, 4294901760
    %v986 = vsub.f32 %v826, %v985
    %987 = vmatpush.msra.mxu0 %v986
    %v988 = vand.u32 %v825, 4294901760
    %v989 = vsub.f32 %v825, %v988
    %990 = vmatpush.msra.mxu0 %v989
    %v991 = vand.u32 %v824, 4294901760
    %v992 = vsub.f32 %v824, %v991
    %993 = vmatpush.msra.mxu0 %v992
    %v994 = vand.u32 %v823, 4294901760
    %v995 = vsub.f32 %v823, %v994
    %996 = vmatpush.msra.mxu0 %v995
    %v997 = vand.u32 %v822, 4294901760
    %v998 = vsub.f32 %v822, %v997
    %999 = vmatpush.msra.mxu0 %v998
    %v1000 = vand.u32 %v821, 4294901760
    %v1001 = vsub.f32 %v821, %v1000
    %1002 = vmatpush.msra.mxu0 %v1001
    %v1003 = vand.u32 %v820, 4294901760
    %v1004 = vsub.f32 %v820, %v1003
    %1005 = vmatpush.msra.mxu0 %v1004
    %v1006 = vand.u32 %v819, 4294901760
    %v1007 = vsub.f32 %v819, %v1006
    %1008 = vmatpush.msra.mxu0 %v1007
    %v1009 = vand.u32 %v818, 4294901760
    %v1010 = vsub.f32 %v818, %v1009
    %1011 = vmatpush.msra.mxu0 %v1010
    %v1012 = vand.u32 %v817, 4294901760
    %v1013 = vsub.f32 %v817, %v1012
    %1014 = vmatpush.msra.mxu0 %v1013
    %v1015 = vand.u32 %v816, 4294901760
    %v1016 = vsub.f32 %v816, %v1015
    %1017 = vmatpush.msra.mxu0 %v1016
    %v1018 = vand.u32 %v815, 4294901760
    %v1019 = vsub.f32 %v815, %v1018
    %1020 = vmatpush.msra.mxu0 %v1019
    %v1021 = vand.u32 %v796, 4294901760
    %v1022 = vsub.f32 %v796, %v1021
    %1023 = vmatmul.f32.gmra.mxu0 %v1022
    %v1024 = vpop.f32.mrf.mxu0
    %v1025 = vadd.f32 %v971, %v1024
    %1026 = vdwg.mxu0
    %v1027 = vand.u32 %v830, 4294901760
    %1028 = vmatpush.msra.mxu0 %v1027
    %v1029 = vand.u32 %v829, 4294901760
    %1030 = vmatpush.msra.mxu0 %v1029
    %v1031 = vand.u32 %v828, 4294901760
    %1032 = vmatpush.msra.mxu0 %v1031
    %v1033 = vand.u32 %v827, 4294901760
    %1034 = vmatpush.msra.mxu0 %v1033
    %v1035 = vand.u32 %v826, 4294901760
    %1036 = vmatpush.msra.mxu0 %v1035
    %v1037 = vand.u32 %v825, 4294901760
    %1038 = vmatpush.msra.mxu0 %v1037
    %v1039 = vand.u32 %v824, 4294901760
    %1040 = vmatpush.msra.mxu0 %v1039
    %v1041 = vand.u32 %v823, 4294901760
    %1042 = vmatpush.msra.mxu0 %v1041
    %v1043 = vand.u32 %v822, 4294901760
    %1044 = vmatpush.msra.mxu0 %v1043
    %v1045 = vand.u32 %v821, 4294901760
    %1046 = vmatpush.msra.mxu0 %v1045
    %v1047 = vand.u32 %v820, 4294901760
    %1048 = vmatpush.msra.mxu0 %v1047
    %v1049 = vand.u32 %v819, 4294901760
    %1050 = vmatpush.msra.mxu0 %v1049
    %v1051 = vand.u32 %v818, 4294901760
    %1052 = vmatpush.msra.mxu0 %v1051
    %v1053 = vand.u32 %v817, 4294901760
    %1054 = vmatpush.msra.mxu0 %v1053
    %v1055 = vand.u32 %v816, 4294901760
    %1056 = vmatpush.msra.mxu0 %v1055
    %v1057 = vand.u32 %v815, 4294901760
    %1058 = vmatpush.msra.mxu0 %v1057
    %v1059 = vand.u32 %v796, 4294901760
    %v1060 = vsub.f32 %v796, %v1059
    %v1061 = vand.u32 %v1060, 4294901760
    %1062 = vmatmul.f32.gmra.mxu0 %v1061
    %v1063 = vpop.f32.mrf.mxu0
    %v1064 = vadd.f32 %v1025, %v1063
    %1065 = vdwg.mxu0
    %v1066 = vand.u32 %v830, 4294901760
    %v1067 = vsub.f32 %v830, %v1066
    %v1068 = vand.u32 %v1067, 4294901760
    %1069 = vmatpush.msra.mxu0 %v1068
    %v1070 = vand.u32 %v829, 4294901760
    %v1071 = vsub.f32 %v829, %v1070
    %v1072 = vand.u32 %v1071, 4294901760
    %1073 = vmatpush.msra.mxu0 %v1072
    %v1074 = vand.u32 %v828, 4294901760
    %v1075 = vsub.f32 %v828, %v1074
    %v1076 = vand.u32 %v1075, 4294901760
    %1077 = vmatpush.msra.mxu0 %v1076
    %v1078 = vand.u32 %v827, 4294901760
    %v1079 = vsub.f32 %v827, %v1078
    %v1080 = vand.u32 %v1079, 4294901760
    %1081 = vmatpush.msra.mxu0 %v1080
    %v1082 = vand.u32 %v826, 4294901760
    %v1083 = vsub.f32 %v826, %v1082
    %v1084 = vand.u32 %v1083, 4294901760
    %1085 = vmatpush.msra.mxu0 %v1084
    %v1086 = vand.u32 %v825, 4294901760
    %v1087 = vsub.f32 %v825, %v1086
    %v1088 = vand.u32 %v1087, 4294901760
    %1089 = vmatpush.msra.mxu0 %v1088
    %v1090 = vand.u32 %v824, 4294901760
    %v1091 = vsub.f32 %v824, %v1090
    %v1092 = vand.u32 %v1091, 4294901760
    %1093 = vmatpush.msra.mxu0 %v1092
    %v1094 = vand.u32 %v823, 4294901760
    %v1095 = vsub.f32 %v823, %v1094
    %v1096 = vand.u32 %v1095, 4294901760
    %1097 = vmatpush.msra.mxu0 %v1096
    %v1098 = vand.u32 %v822, 4294901760
    %v1099 = vsub.f32 %v822, %v1098
    %v1100 = vand.u32 %v1099, 4294901760
    %1101 = vmatpush.msra.mxu0 %v1100
    %v1102 = vand.u32 %v821, 4294901760
    %v1103 = vsub.f32 %v821, %v1102
    %v1104 = vand.u32 %v1103, 4294901760
    %1105 = vmatpush.msra.mxu0 %v1104
    %v1106 = vand.u32 %v820, 4294901760
    %v1107 = vsub.f32 %v820, %v1106
    %v1108 = vand.u32 %v1107, 4294901760
    %1109 = vmatpush.msra.mxu0 %v1108
    %v1110 = vand.u32 %v819, 4294901760
    %v1111 = vsub.f32 %v819, %v1110
    %v1112 = vand.u32 %v1111, 4294901760
    %1113 = vmatpush.msra.mxu0 %v1112
    %v1114 = vand.u32 %v818, 4294901760
    %v1115 = vsub.f32 %v818, %v1114
    %v1116 = vand.u32 %v1115, 4294901760
    %1117 = vmatpush.msra.mxu0 %v1116
    %v1118 = vand.u32 %v817, 4294901760
    %v1119 = vsub.f32 %v817, %v1118
    %v1120 = vand.u32 %v1119, 4294901760
    %1121 = vmatpush.msra.mxu0 %v1120
    %v1122 = vand.u32 %v816, 4294901760
    %v1123 = vsub.f32 %v816, %v1122
    %v1124 = vand.u32 %v1123, 4294901760
    %1125 = vmatpush.msra.mxu0 %v1124
    %v1126 = vand.u32 %v815, 4294901760
    %v1127 = vsub.f32 %v815, %v1126
    %v1128 = vand.u32 %v1127, 4294901760
    %1129 = vmatpush.msra.mxu0 %v1128
    %v1130 = vand.u32 %v796, 4294901760
    %1131 = vmatmul.f32.gmra.mxu0 %v1130
    %v1132 = vpop.f32.mrf.mxu0
    %v1133 = vadd.f32 %v1064, %v1132
    %1134 = vdwg.mxu0
    %v1135 = vand.u32 %v830, 4294901760
    %1136 = vmatpush.msra.mxu0 %v1135
    %v1137 = vand.u32 %v829, 4294901760
    %1138 = vmatpush.msra.mxu0 %v1137
    %v1139 = vand.u32 %v828, 4294901760
    %1140 = vmatpush.msra.mxu0 %v1139
    %v1141 = vand.u32 %v827, 4294901760
    %1142 = vmatpush.msra.mxu0 %v1141
    %v1143 = vand.u32 %v826, 4294901760
    %1144 = vmatpush.msra.mxu0 %v1143
    %v1145 = vand.u32 %v825, 4294901760
    %1146 = vmatpush.msra.mxu0 %v1145
    %v1147 = vand.u32 %v824, 4294901760
    %1148 = vmatpush.msra.mxu0 %v1147
    %v1149 = vand.u32 %v823, 4294901760
    %1150 = vmatpush.msra.mxu0 %v1149
    %v1151 = vand.u32 %v822, 4294901760
    %1152 = vmatpush.msra.mxu0 %v1151
    %v1153 = vand.u32 %v821, 4294901760
    %1154 = vmatpush.msra.mxu0 %v1153
    %v1155 = vand.u32 %v820, 4294901760
    %1156 = vmatpush.msra.mxu0 %v1155
    %v1157 = vand.u32 %v819, 4294901760
    %1158 = vmatpush.msra.mxu0 %v1157
    %v1159 = vand.u32 %v818, 4294901760
    %1160 = vmatpush.msra.mxu0 %v1159
    %v1161 = vand.u32 %v817, 4294901760
    %1162 = vmatpush.msra.mxu0 %v1161
    %v1163 = vand.u32 %v816, 4294901760
    %1164 = vmatpush.msra.mxu0 %v1163
    %v1165 = vand.u32 %v815, 4294901760
    %1166 = vmatpush.msra.mxu0 %v1165
    %v1167 = vand.u32 %v796, 4294901760
    %1168 = vmatmul.f32.gmra.mxu0 %v1167
    %v1169 = vpop.f32.mrf.mxu0
    %v1170 = vadd.f32 %v1133, %v1169
    %1171 = vdwg.mxu0
    %v1172 = vand.u32 %v813, 4294901760
    %1173 = vmatpush.msra.mxu0 %v1172
    %v1174 = vand.u32 %v812, 4294901760
    %1175 = vmatpush.msra.mxu0 %v1174
    %v1176 = vand.u32 %v811, 4294901760
    %1177 = vmatpush.msra.mxu0 %v1176
    %v1178 = vand.u32 %v810, 4294901760
    %1179 = vmatpush.msra.mxu0 %v1178
    %v1180 = vand.u32 %v809, 4294901760
    %1181 = vmatpush.msra.mxu0 %v1180
    %v1182 = vand.u32 %v808, 4294901760
    %1183 = vmatpush.msra.mxu0 %v1182
    %v1184 = vand.u32 %v807, 4294901760
    %1185 = vmatpush.msra.mxu0 %v1184
    %v1186 = vand.u32 %v806, 4294901760
    %1187 = vmatpush.msra.mxu0 %v1186
    %v1188 = vand.u32 %v805, 4294901760
    %1189 = vmatpush.msra.mxu0 %v1188
    %v1190 = vand.u32 %v804, 4294901760
    %1191 = vmatpush.msra.mxu0 %v1190
    %v1192 = vand.u32 %v803, 4294901760
    %1193 = vmatpush.msra.mxu0 %v1192
    %v1194 = vand.u32 %v802, 4294901760
    %1195 = vmatpush.msra.mxu0 %v1194
    %v1196 = vand.u32 %v801, 4294901760
    %1197 = vmatpush.msra.mxu0 %v1196
    %v1198 = vand.u32 %v800, 4294901760
    %1199 = vmatpush.msra.mxu0 %v1198
    %v1200 = vand.u32 %v799, 4294901760
    %1201 = vmatpush.msra.mxu0 %v1200
    %v1202 = vand.u32 %v798, 4294901760
    %1203 = vmatpush.msra.mxu0 %v1202
    %v1204 = vand.u32 %v435, 4294901760
    %v1205 = vsub.f32 %v435, %v1204
    %v1206 = vand.u32 %v1205, 4294901760
    %v1207 = vsub.f32 %v1205, %v1206
    %v1208 = vand.u32 %v1207, 4294901760
    %1209 = vmatmul.f32.gmra.mxu0 %v1208
    %v1210 = vpop.f32.mrf.mxu0
    %v1211 = vadd.f32 %v1170, %v1210
    %1212 = vdwg.mxu0
    %v1213 = vand.u32 %v813, 4294901760
    %v1214 = vsub.f32 %v813, %v1213
    %v1215 = vand.u32 %v1214, 4294901760
    %v1216 = vsub.f32 %v1214, %v1215
    %v1217 = vand.u32 %v1216, 4294901760
    %1218 = vmatpush.msra.mxu0 %v1217
    %v1219 = vand.u32 %v812, 4294901760
    %v1220 = vsub.f32 %v812, %v1219
    %v1221 = vand.u32 %v1220, 4294901760
    %v1222 = vsub.f32 %v1220, %v1221
    %v1223 = vand.u32 %v1222, 4294901760
    %1224 = vmatpush.msra.mxu0 %v1223
    %v1225 = vand.u32 %v811, 4294901760
    %v1226 = vsub.f32 %v811, %v1225
    %v1227 = vand.u32 %v1226, 4294901760
    %v1228 = vsub.f32 %v1226, %v1227
    %v1229 = vand.u32 %v1228, 4294901760
    %1230 = vmatpush.msra.mxu0 %v1229
    %v1231 = vand.u32 %v810, 4294901760
    %v1232 = vsub.f32 %v810, %v1231
    %v1233 = vand.u32 %v1232, 4294901760
    %v1234 = vsub.f32 %v1232, %v1233
    %v1235 = vand.u32 %v1234, 4294901760
    %1236 = vmatpush.msra.mxu0 %v1235
    %v1237 = vand.u32 %v809, 4294901760
    %v1238 = vsub.f32 %v809, %v1237
    %v1239 = vand.u32 %v1238, 4294901760
    %v1240 = vsub.f32 %v1238, %v1239
    %v1241 = vand.u32 %v1240, 4294901760
    %1242 = vmatpush.msra.mxu0 %v1241
    %v1243 = vand.u32 %v808, 4294901760
    %v1244 = vsub.f32 %v808, %v1243
    %v1245 = vand.u32 %v1244, 4294901760
    %v1246 = vsub.f32 %v1244, %v1245
    %v1247 = vand.u32 %v1246, 4294901760
    %1248 = vmatpush.msra.mxu0 %v1247
    %v1249 = vand.u32 %v807, 4294901760
    %v1250 = vsub.f32 %v807, %v1249
    %v1251 = vand.u32 %v1250, 4294901760
    %v1252 = vsub.f32 %v1250, %v1251
    %v1253 = vand.u32 %v1252, 4294901760
    %1254 = vmatpush.msra.mxu0 %v1253
    %v1255 = vand.u32 %v806, 4294901760
    %v1256 = vsub.f32 %v806, %v1255
    %v1257 = vand.u32 %v1256, 4294901760
    %v1258 = vsub.f32 %v1256, %v1257
    %v1259 = vand.u32 %v1258, 4294901760
    %1260 = vmatpush.msra.mxu0 %v1259
    %v1261 = vand.u32 %v805, 4294901760
    %v1262 = vsub.f32 %v805, %v1261
    %v1263 = vand.u32 %v1262, 4294901760
    %v1264 = vsub.f32 %v1262, %v1263
    %v1265 = vand.u32 %v1264, 4294901760
    %1266 = vmatpush.msra.mxu0 %v1265
    %v1267 = vand.u32 %v804, 4294901760
    %v1268 = vsub.f32 %v804, %v1267
    %v1269 = vand.u32 %v1268, 4294901760
    %v1270 = vsub.f32 %v1268, %v1269
    %v1271 = vand.u32 %v1270, 4294901760
    %1272 = vmatpush.msra.mxu0 %v1271
    %v1273 = vand.u32 %v803, 4294901760
    %v1274 = vsub.f32 %v803, %v1273
    %v1275 = vand.u32 %v1274, 4294901760
    %v1276 = vsub.f32 %v1274, %v1275
    %v1277 = vand.u32 %v1276, 4294901760
    %1278 = vmatpush.msra.mxu0 %v1277
    %v1279 = vand.u32 %v802, 4294901760
    %v1280 = vsub.f32 %v802, %v1279
    %v1281 = vand.u32 %v1280, 4294901760
    %v1282 = vsub.f32 %v1280, %v1281
    %v1283 = vand.u32 %v1282, 4294901760
    %1284 = vmatpush.msra.mxu0 %v1283
    %v1285 = vand.u32 %v801, 4294901760
    %v1286 = vsub.f32 %v801, %v1285
    %v1287 = vand.u32 %v1286, 4294901760
    %v1288 = vsub.f32 %v1286, %v1287
    %v1289 = vand.u32 %v1288, 4294901760
    %1290 = vmatpush.msra.mxu0 %v1289
    %v1291 = vand.u32 %v800, 4294901760
    %v1292 = vsub.f32 %v800, %v1291
    %v1293 = vand.u32 %v1292, 4294901760
    %v1294 = vsub.f32 %v1292, %v1293
    %v1295 = vand.u32 %v1294, 4294901760
    %1296 = vmatpush.msra.mxu0 %v1295
    %v1297 = vand.u32 %v799, 4294901760
    %v1298 = vsub.f32 %v799, %v1297
    %v1299 = vand.u32 %v1298, 4294901760
    %v1300 = vsub.f32 %v1298, %v1299
    %v1301 = vand.u32 %v1300, 4294901760
    %1302 = vmatpush.msra.mxu0 %v1301
    %v1303 = vand.u32 %v798, 4294901760
    %v1304 = vsub.f32 %v798, %v1303
    %v1305 = vand.u32 %v1304, 4294901760
    %v1306 = vsub.f32 %v1304, %v1305
    %v1307 = vand.u32 %v1306, 4294901760
    %1308 = vmatpush.msra.mxu0 %v1307
    %v1309 = vand.u32 %v435, 4294901760
    %1310 = vmatmul.f32.gmra.mxu0 %v1309
    %v1311 = vpop.f32.mrf.mxu0
    %v1312 = vadd.f32 %v1211, %v1311
    %1313 = vdwg.mxu0
    %v1314 = vand.u32 %v813, 4294901760
    %v1315 = vsub.f32 %v813, %v1314
    %1316 = vmatpush.msra.mxu0 %v1315
    %v1317 = vand.u32 %v812, 4294901760
    %v1318 = vsub.f32 %v812, %v1317
    %1319 = vmatpush.msra.mxu0 %v1318
    %v1320 = vand.u32 %v811, 4294901760
    %v1321 = vsub.f32 %v811, %v1320
    %1322 = vmatpush.msra.mxu0 %v1321
    %v1323 = vand.u32 %v810, 4294901760
    %v1324 = vsub.f32 %v810, %v1323
    %1325 = vmatpush.msra.mxu0 %v1324
    %v1326 = vand.u32 %v809, 4294901760
    %v1327 = vsub.f32 %v809, %v1326
    %1328 = vmatpush.msra.mxu0 %v1327
    %v1329 = vand.u32 %v808, 4294901760
    %v1330 = vsub.f32 %v808, %v1329
    %1331 = vmatpush.msra.mxu0 %v1330
    %v1332 = vand.u32 %v807, 4294901760
    %v1333 = vsub.f32 %v807, %v1332
    %1334 = vmatpush.msra.mxu0 %v1333
    %v1335 = vand.u32 %v806, 4294901760
    %v1336 = vsub.f32 %v806, %v1335
    %1337 = vmatpush.msra.mxu0 %v1336
    %v1338 = vand.u32 %v805, 4294901760
    %v1339 = vsub.f32 %v805, %v1338
    %1340 = vmatpush.msra.mxu0 %v1339
    %v1341 = vand.u32 %v804, 4294901760
    %v1342 = vsub.f32 %v804, %v1341
    %1343 = vmatpush.msra.mxu0 %v1342
    %v1344 = vand.u32 %v803, 4294901760
    %v1345 = vsub.f32 %v803, %v1344
    %1346 = vmatpush.msra.mxu0 %v1345
    %v1347 = vand.u32 %v802, 4294901760
    %v1348 = vsub.f32 %v802, %v1347
    %1349 = vmatpush.msra.mxu0 %v1348
    %v1350 = vand.u32 %v801, 4294901760
    %v1351 = vsub.f32 %v801, %v1350
    %1352 = vmatpush.msra.mxu0 %v1351
    %v1353 = vand.u32 %v800, 4294901760
    %v1354 = vsub.f32 %v800, %v1353
    %1355 = vmatpush.msra.mxu0 %v1354
    %v1356 = vand.u32 %v799, 4294901760
    %v1357 = vsub.f32 %v799, %v1356
    %1358 = vmatpush.msra.mxu0 %v1357
    %v1359 = vand.u32 %v798, 4294901760
    %v1360 = vsub.f32 %v798, %v1359
    %1361 = vmatpush.msra.mxu0 %v1360
    %v1362 = vand.u32 %v435, 4294901760
    %v1363 = vsub.f32 %v435, %v1362
    %1364 = vmatmul.f32.gmra.mxu0 %v1363
    %v1365 = vpop.f32.mrf.mxu0
    %v1366 = vadd.f32 %v1312, %v1365
    %1367 = vdwg.mxu0
    %v1368 = vand.u32 %v813, 4294901760
    %1369 = vmatpush.msra.mxu0 %v1368
    %v1370 = vand.u32 %v812, 4294901760
    %1371 = vmatpush.msra.mxu0 %v1370
    %v1372 = vand.u32 %v811, 4294901760
    %1373 = vmatpush.msra.mxu0 %v1372
    %v1374 = vand.u32 %v810, 4294901760
    %1375 = vmatpush.msra.mxu0 %v1374
    %v1376 = vand.u32 %v809, 4294901760
    %1377 = vmatpush.msra.mxu0 %v1376
    %v1378 = vand.u32 %v808, 4294901760
    %1379 = vmatpush.msra.mxu0 %v1378
    %v1380 = vand.u32 %v807, 4294901760
    %1381 = vmatpush.msra.mxu0 %v1380
    %v1382 = vand.u32 %v806, 4294901760
    %1383 = vmatpush.msra.mxu0 %v1382
    %v1384 = vand.u32 %v805, 4294901760
    %1385 = vmatpush.msra.mxu0 %v1384
    %v1386 = vand.u32 %v804, 4294901760
    %1387 = vmatpush.msra.mxu0 %v1386
    %v1388 = vand.u32 %v803, 4294901760
    %1389 = vmatpush.msra.mxu0 %v1388
    %v1390 = vand.u32 %v802, 4294901760
    %1391 = vmatpush.msra.mxu0 %v1390
    %v1392 = vand.u32 %v801, 4294901760
    %1393 = vmatpush.msra.mxu0 %v1392
    %v1394 = vand.u32 %v800, 4294901760
    %1395 = vmatpush.msra.mxu0 %v1394
    %v1396 = vand.u32 %v799, 4294901760
    %1397 = vmatpush.msra.mxu0 %v1396
    %v1398 = vand.u32 %v798, 4294901760
    %1399 = vmatpush.msra.mxu0 %v1398
    %v1400 = vand.u32 %v435, 4294901760
    %v1401 = vsub.f32 %v435, %v1400
    %v1402 = vand.u32 %v1401, 4294901760
    %1403 = vmatmul.f32.gmra.mxu0 %v1402
    %v1404 = vpop.f32.mrf.mxu0
    %v1405 = vadd.f32 %v1366, %v1404
    %1406 = vdwg.mxu0
    %v1407 = vand.u32 %v813, 4294901760
    %v1408 = vsub.f32 %v813, %v1407
    %v1409 = vand.u32 %v1408, 4294901760
    %1410 = vmatpush.msra.mxu0 %v1409
    %v1411 = vand.u32 %v812, 4294901760
    %v1412 = vsub.f32 %v812, %v1411
    %v1413 = vand.u32 %v1412, 4294901760
    %1414 = vmatpush.msra.mxu0 %v1413
    %v1415 = vand.u32 %v811, 4294901760
    %v1416 = vsub.f32 %v811, %v1415
    %v1417 = vand.u32 %v1416, 4294901760
    %1418 = vmatpush.msra.mxu0 %v1417
    %v1419 = vand.u32 %v810, 4294901760
    %v1420 = vsub.f32 %v810, %v1419
    %v1421 = vand.u32 %v1420, 4294901760
    %1422 = vmatpush.msra.mxu0 %v1421
    %v1423 = vand.u32 %v809, 4294901760
    %v1424 = vsub.f32 %v809, %v1423
    %v1425 = vand.u32 %v1424, 4294901760
    %1426 = vmatpush.msra.mxu0 %v1425
    %v1427 = vand.u32 %v808, 4294901760
    %v1428 = vsub.f32 %v808, %v1427
    %v1429 = vand.u32 %v1428, 4294901760
    %1430 = vmatpush.msra.mxu0 %v1429
    %v1431 = vand.u32 %v807, 4294901760
    %v1432 = vsub.f32 %v807, %v1431
    %v1433 = vand.u32 %v1432, 4294901760
    %1434 = vmatpush.msra.mxu0 %v1433
    %v1435 = vand.u32 %v806, 4294901760
    %v1436 = vsub.f32 %v806, %v1435
    %v1437 = vand.u32 %v1436, 4294901760
    %1438 = vmatpush.msra.mxu0 %v1437
    %v1439 = vand.u32 %v805, 4294901760
    %v1440 = vsub.f32 %v805, %v1439
    %v1441 = vand.u32 %v1440, 4294901760
    %1442 = vmatpush.msra.mxu0 %v1441
    %v1443 = vand.u32 %v804, 4294901760
    %v1444 = vsub.f32 %v804, %v1443
    %v1445 = vand.u32 %v1444, 4294901760
    %1446 = vmatpush.msra.mxu0 %v1445
    %v1447 = vand.u32 %v803, 4294901760
    %v1448 = vsub.f32 %v803, %v1447
    %v1449 = vand.u32 %v1448, 4294901760
    %1450 = vmatpush.msra.mxu0 %v1449
    %v1451 = vand.u32 %v802, 4294901760
    %v1452 = vsub.f32 %v802, %v1451
    %v1453 = vand.u32 %v1452, 4294901760
    %1454 = vmatpush.msra.mxu0 %v1453
    %v1455 = vand.u32 %v801, 4294901760
    %v1456 = vsub.f32 %v801, %v1455
    %v1457 = vand.u32 %v1456, 4294901760
    %1458 = vmatpush.msra.mxu0 %v1457
    %v1459 = vand.u32 %v800, 4294901760
    %v1460 = vsub.f32 %v800, %v1459
    %v1461 = vand.u32 %v1460, 4294901760
    %1462 = vmatpush.msra.mxu0 %v1461
    %v1463 = vand.u32 %v799, 4294901760
    %v1464 = vsub.f32 %v799, %v1463
    %v1465 = vand.u32 %v1464, 4294901760
    %1466 = vmatpush.msra.mxu0 %v1465
    %v1467 = vand.u32 %v798, 4294901760
    %v1468 = vsub.f32 %v798, %v1467
    %v1469 = vand.u32 %v1468, 4294901760
    %1470 = vmatpush.msra.mxu0 %v1469
    %v1471 = vand.u32 %v435, 4294901760
    %1472 = vmatmul.f32.gmra.mxu0 %v1471
    %v1473 = vpop.f32.mrf.mxu0
    %v1474 = vadd.f32 %v1405, %v1473
    %1475 = vdwg.mxu0
    %v1476 = vand.u32 %v813, 4294901760
    %1477 = vmatpush.msra.mxu0 %v1476
    %v1478 = vand.u32 %v812, 4294901760
    %1479 = vmatpush.msra.mxu0 %v1478
    %v1480 = vand.u32 %v811, 4294901760
    %1481 = vmatpush.msra.mxu0 %v1480
    %v1482 = vand.u32 %v810, 4294901760
    %1483 = vmatpush.msra.mxu0 %v1482
    %v1484 = vand.u32 %v809, 4294901760
    %1485 = vmatpush.msra.mxu0 %v1484
    %v1486 = vand.u32 %v808, 4294901760
    %1487 = vmatpush.msra.mxu0 %v1486
    %v1488 = vand.u32 %v807, 4294901760
    %1489 = vmatpush.msra.mxu0 %v1488
    %v1490 = vand.u32 %v806, 4294901760
    %1491 = vmatpush.msra.mxu0 %v1490
    %v1492 = vand.u32 %v805, 4294901760
    %1493 = vmatpush.msra.mxu0 %v1492
    %v1494 = vand.u32 %v804, 4294901760
    %1495 = vmatpush.msra.mxu0 %v1494
    %v1496 = vand.u32 %v803, 4294901760
    %1497 = vmatpush.msra.mxu0 %v1496
    %v1498 = vand.u32 %v802, 4294901760
    %1499 = vmatpush.msra.mxu0 %v1498
    %v1500 = vand.u32 %v801, 4294901760
    %1501 = vmatpush.msra.mxu0 %v1500
    %v1502 = vand.u32 %v800, 4294901760
    %1503 = vmatpush.msra.mxu0 %v1502
    %v1504 = vand.u32 %v799, 4294901760
    %1505 = vmatpush.msra.mxu0 %v1504
    %v1506 = vand.u32 %v798, 4294901760
    %1507 = vmatpush.msra.mxu0 %v1506
    %v1508 = vand.u32 %v435, 4294901760
    %1509 = vmatmul.f32.gmra.mxu0 %v1508
    %v1510 = vpop.f32.mrf.mxu0
    %v1511 = vadd.f32 %v1474, %v1510
    %1512 = vdwg.mxu0
    %v1513 = vperm.slane %v75, 2
    %v1514 = vadd.f32 %v1511, %v1513
    %v1515 = vmax.f32 %v1514, 0.0
    %s1516 = scalar_lea.vmem [#allocation7], 512
    %v1517 = vld [vmem:[%s1516] sm:$0xff]
    %v1518 = vld [vmem:[%s1516 + $0x8] sm:$0xff]
    %v1519 = vld [vmem:[%s1516 + $0x10] sm:$0xff]
    %v1520 = vld [vmem:[%s1516 + $0x18] sm:$0xff]
    %v1521 = vld [vmem:[%s1516 + $0x20] sm:$0xff]
    %v1522 = vld [vmem:[%s1516 + $0x28] sm:$0xff]
    %v1523 = vld [vmem:[%s1516 + $0x30] sm:$0xff]
    %v1524 = vld [vmem:[%s1516 + $0x38] sm:$0xff]
    %v1525 = vld [vmem:[%s1516 + $0x40] sm:$0xff]
    %v1526 = vld [vmem:[%s1516 + $0x48] sm:$0xff]
    %v1527 = vld [vmem:[%s1516 + $0x50] sm:$0xff]
    %v1528 = vld [vmem:[%s1516 + $0x58] sm:$0xff]
    %v1529 = vld [vmem:[%s1516 + $0x60] sm:$0xff]
    %v1530 = vld [vmem:[%s1516 + $0x68] sm:$0xff]
    %v1531 = vld [vmem:[%s1516 + $0x70] sm:$0xff]
    %v1532 = vld [vmem:[%s1516 + $0x78] sm:$0xff]
    %v1533 = vperm.slane %v75, 3
    %v1534 = vand.u32 %v1532, 4294901760
    %1535 = vmatpush.msra.mxu0 %v1534
    %v1536 = vand.u32 %v1531, 4294901760
    %1537 = vmatpush.msra.mxu0 %v1536
    %v1538 = vand.u32 %v1530, 4294901760
    %1539 = vmatpush.msra.mxu0 %v1538
    %v1540 = vand.u32 %v1529, 4294901760
    %1541 = vmatpush.msra.mxu0 %v1540
    %v1542 = vand.u32 %v1528, 4294901760
    %1543 = vmatpush.msra.mxu0 %v1542
    %v1544 = vand.u32 %v1527, 4294901760
    %1545 = vmatpush.msra.mxu0 %v1544
    %v1546 = vand.u32 %v1526, 4294901760
    %1547 = vmatpush.msra.mxu0 %v1546
    %v1548 = vand.u32 %v1525, 4294901760
    %1549 = vmatpush.msra.mxu0 %v1548
    %v1550 = vand.u32 %v1524, 4294901760
    %1551 = vmatpush.msra.mxu0 %v1550
    %v1552 = vand.u32 %v1523, 4294901760
    %1553 = vmatpush.msra.mxu0 %v1552
    %v1554 = vand.u32 %v1522, 4294901760
    %1555 = vmatpush.msra.mxu0 %v1554
    %v1556 = vand.u32 %v1521, 4294901760
    %1557 = vmatpush.msra.mxu0 %v1556
    %v1558 = vand.u32 %v1520, 4294901760
    %1559 = vmatpush.msra.mxu0 %v1558
    %v1560 = vand.u32 %v1519, 4294901760
    %1561 = vmatpush.msra.mxu0 %v1560
    %v1562 = vand.u32 %v1518, 4294901760
    %1563 = vmatpush.msra.mxu0 %v1562
    %v1564 = vand.u32 %v1517, 4294901760
    %1565 = vmatpush.msra.mxu0 %v1564
    %v1566 = vand.u32 %v1515, 4294901760
    %v1567 = vsub.f32 %v1515, %v1566
    %v1568 = vand.u32 %v1567, 4294901760
    %v1569 = vsub.f32 %v1567, %v1568
    %v1570 = vand.u32 %v1569, 4294901760
    %1571 = vmatmul.f32.gmra.mxu0 %v1570
    %v1572 = vpop.f32.mrf.mxu0
    %v1573 = vadd.f32 %v1533, %v1572
    %1574 = vdwg.mxu0
    %v1575 = vand.u32 %v1532, 4294901760
    %v1576 = vsub.f32 %v1532, %v1575
    %v1577 = vand.u32 %v1576, 4294901760
    %v1578 = vsub.f32 %v1576, %v1577
    %v1579 = vand.u32 %v1578, 4294901760
    %1580 = vmatpush.msra.mxu0 %v1579
    %v1581 = vand.u32 %v1531, 4294901760
    %v1582 = vsub.f32 %v1531, %v1581
    %v1583 = vand.u32 %v1582, 4294901760
    %v1584 = vsub.f32 %v1582, %v1583
    %v1585 = vand.u32 %v1584, 4294901760
    %1586 = vmatpush.msra.mxu0 %v1585
    %v1587 = vand.u32 %v1530, 4294901760
    %v1588 = vsub.f32 %v1530, %v1587
    %v1589 = vand.u32 %v1588, 4294901760
    %v1590 = vsub.f32 %v1588, %v1589
    %v1591 = vand.u32 %v1590, 4294901760
    %1592 = vmatpush.msra.mxu0 %v1591
    %v1593 = vand.u32 %v1529, 4294901760
    %v1594 = vsub.f32 %v1529, %v1593
    %v1595 = vand.u32 %v1594, 4294901760
    %v1596 = vsub.f32 %v1594, %v1595
    %v1597 = vand.u32 %v1596, 4294901760
    %1598 = vmatpush.msra.mxu0 %v1597
    %v1599 = vand.u32 %v1528, 4294901760
    %v1600 = vsub.f32 %v1528, %v1599
    %v1601 = vand.u32 %v1600, 4294901760
    %v1602 = vsub.f32 %v1600, %v1601
    %v1603 = vand.u32 %v1602, 4294901760
    %1604 = vmatpush.msra.mxu0 %v1603
    %v1605 = vand.u32 %v1527, 4294901760
    %v1606 = vsub.f32 %v1527, %v1605
    %v1607 = vand.u32 %v1606, 4294901760
    %v1608 = vsub.f32 %v1606, %v1607
    %v1609 = vand.u32 %v1608, 4294901760
    %1610 = vmatpush.msra.mxu0 %v1609
    %v1611 = vand.u32 %v1526, 4294901760
    %v1612 = vsub.f32 %v1526, %v1611
    %v1613 = vand.u32 %v1612, 4294901760
    %v1614 = vsub.f32 %v1612, %v1613
    %v1615 = vand.u32 %v1614, 4294901760
    %1616 = vmatpush.msra.mxu0 %v1615
    %v1617 = vand.u32 %v1525, 4294901760
    %v1618 = vsub.f32 %v1525, %v1617
    %v1619 = vand.u32 %v1618, 4294901760
    %v1620 = vsub.f32 %v1618, %v1619
    %v1621 = vand.u32 %v1620, 4294901760
    %1622 = vmatpush.msra.mxu0 %v1621
    %v1623 = vand.u32 %v1524, 4294901760
    %v1624 = vsub.f32 %v1524, %v1623
    %v1625 = vand.u32 %v1624, 4294901760
    %v1626 = vsub.f32 %v1624, %v1625
    %v1627 = vand.u32 %v1626, 4294901760
    %1628 = vmatpush.msra.mxu0 %v1627
    %v1629 = vand.u32 %v1523, 4294901760
    %v1630 = vsub.f32 %v1523, %v1629
    %v1631 = vand.u32 %v1630, 4294901760
    %v1632 = vsub.f32 %v1630, %v1631
    %v1633 = vand.u32 %v1632, 4294901760
    %1634 = vmatpush.msra.mxu0 %v1633
    %v1635 = vand.u32 %v1522, 4294901760
    %v1636 = vsub.f32 %v1522, %v1635
    %v1637 = vand.u32 %v1636, 4294901760
    %v1638 = vsub.f32 %v1636, %v1637
    %v1639 = vand.u32 %v1638, 4294901760
    %1640 = vmatpush.msra.mxu0 %v1639
    %v1641 = vand.u32 %v1521, 4294901760
    %v1642 = vsub.f32 %v1521, %v1641
    %v1643 = vand.u32 %v1642, 4294901760
    %v1644 = vsub.f32 %v1642, %v1643
    %v1645 = vand.u32 %v1644, 4294901760
    %1646 = vmatpush.msra.mxu0 %v1645
    %v1647 = vand.u32 %v1520, 4294901760
    %v1648 = vsub.f32 %v1520, %v1647
    %v1649 = vand.u32 %v1648, 4294901760
    %v1650 = vsub.f32 %v1648, %v1649
    %v1651 = vand.u32 %v1650, 4294901760
    %1652 = vmatpush.msra.mxu0 %v1651
    %v1653 = vand.u32 %v1519, 4294901760
    %v1654 = vsub.f32 %v1519, %v1653
    %v1655 = vand.u32 %v1654, 4294901760
    %v1656 = vsub.f32 %v1654, %v1655
    %v1657 = vand.u32 %v1656, 4294901760
    %1658 = vmatpush.msra.mxu0 %v1657
    %v1659 = vand.u32 %v1518, 4294901760
    %v1660 = vsub.f32 %v1518, %v1659
    %v1661 = vand.u32 %v1660, 4294901760
    %v1662 = vsub.f32 %v1660, %v1661
    %v1663 = vand.u32 %v1662, 4294901760
    %1664 = vmatpush.msra.mxu0 %v1663
    %v1665 = vand.u32 %v1517, 4294901760
    %v1666 = vsub.f32 %v1517, %v1665
    %v1667 = vand.u32 %v1666, 4294901760
    %v1668 = vsub.f32 %v1666, %v1667
    %v1669 = vand.u32 %v1668, 4294901760
    %1670 = vmatpush.msra.mxu0 %v1669
    %v1671 = vand.u32 %v1515, 4294901760
    %1672 = vmatmul.f32.gmra.mxu0 %v1671
    %v1673 = vpop.f32.mrf.mxu0
    %v1674 = vadd.f32 %v1573, %v1673
    %1675 = vdwg.mxu0
    %v1676 = vand.u32 %v1532, 4294901760
    %v1677 = vsub.f32 %v1532, %v1676
    %1678 = vmatpush.msra.mxu0 %v1677
    %v1679 = vand.u32 %v1531, 4294901760
    %v1680 = vsub.f32 %v1531, %v1679
    %1681 = vmatpush.msra.mxu0 %v1680
    %v1682 = vand.u32 %v1530, 4294901760
    %v1683 = vsub.f32 %v1530, %v1682
    %1684 = vmatpush.msra.mxu0 %v1683
    %v1685 = vand.u32 %v1529, 4294901760
    %v1686 = vsub.f32 %v1529, %v1685
    %1687 = vmatpush.msra.mxu0 %v1686
    %v1688 = vand.u32 %v1528, 4294901760
    %v1689 = vsub.f32 %v1528, %v1688
    %1690 = vmatpush.msra.mxu0 %v1689
    %v1691 = vand.u32 %v1527, 4294901760
    %v1692 = vsub.f32 %v1527, %v1691
    %1693 = vmatpush.msra.mxu0 %v1692
    %v1694 = vand.u32 %v1526, 4294901760
    %v1695 = vsub.f32 %v1526, %v1694
    %1696 = vmatpush.msra.mxu0 %v1695
    %v1697 = vand.u32 %v1525, 4294901760
    %v1698 = vsub.f32 %v1525, %v1697
    %1699 = vmatpush.msra.mxu0 %v1698
    %v1700 = vand.u32 %v1524, 4294901760
    %v1701 = vsub.f32 %v1524, %v1700
    %1702 = vmatpush.msra.mxu0 %v1701
    %v1703 = vand.u32 %v1523, 4294901760
    %v1704 = vsub.f32 %v1523, %v1703
    %1705 = vmatpush.msra.mxu0 %v1704
    %v1706 = vand.u32 %v1522, 4294901760
    %v1707 = vsub.f32 %v1522, %v1706
    %1708 = vmatpush.msra.mxu0 %v1707
    %v1709 = vand.u32 %v1521, 4294901760
    %v1710 = vsub.f32 %v1521, %v1709
    %1711 = vmatpush.msra.mxu0 %v1710
    %v1712 = vand.u32 %v1520, 4294901760
    %v1713 = vsub.f32 %v1520, %v1712
    %1714 = vmatpush.msra.mxu0 %v1713
    %v1715 = vand.u32 %v1519, 4294901760
    %v1716 = vsub.f32 %v1519, %v1715
    %1717 = vmatpush.msra.mxu0 %v1716
    %v1718 = vand.u32 %v1518, 4294901760
    %v1719 = vsub.f32 %v1518, %v1718
    %1720 = vmatpush.msra.mxu0 %v1719
    %v1721 = vand.u32 %v1517, 4294901760
    %v1722 = vsub.f32 %v1517, %v1721
    %1723 = vmatpush.msra.mxu0 %v1722
    %v1724 = vand.u32 %v1515, 4294901760
    %v1725 = vsub.f32 %v1515, %v1724
    %1726 = vmatmul.f32.gmra.mxu0 %v1725
    %v1727 = vpop.f32.mrf.mxu0
    %v1728 = vadd.f32 %v1674, %v1727
    %1729 = vdwg.mxu0
    %v1730 = vand.u32 %v1532, 4294901760
    %1731 = vmatpush.msra.mxu0 %v1730
    %v1732 = vand.u32 %v1531, 4294901760
    %1733 = vmatpush.msra.mxu0 %v1732
    %v1734 = vand.u32 %v1530, 4294901760
    %1735 = vmatpush.msra.mxu0 %v1734
    %v1736 = vand.u32 %v1529, 4294901760
    %1737 = vmatpush.msra.mxu0 %v1736
    %v1738 = vand.u32 %v1528, 4294901760
    %1739 = vmatpush.msra.mxu0 %v1738
    %v1740 = vand.u32 %v1527, 4294901760
    %1741 = vmatpush.msra.mxu0 %v1740
    %v1742 = vand.u32 %v1526, 4294901760
    %1743 = vmatpush.msra.mxu0 %v1742
    %v1744 = vand.u32 %v1525, 4294901760
    %1745 = vmatpush.msra.mxu0 %v1744
    %v1746 = vand.u32 %v1524, 4294901760
    %1747 = vmatpush.msra.mxu0 %v1746
    %v1748 = vand.u32 %v1523, 4294901760
    %1749 = vmatpush.msra.mxu0 %v1748
    %v1750 = vand.u32 %v1522, 4294901760
    %1751 = vmatpush.msra.mxu0 %v1750
    %v1752 = vand.u32 %v1521, 4294901760
    %1753 = vmatpush.msra.mxu0 %v1752
    %v1754 = vand.u32 %v1520, 4294901760
    %1755 = vmatpush.msra.mxu0 %v1754
    %v1756 = vand.u32 %v1519, 4294901760
    %1757 = vmatpush.msra.mxu0 %v1756
    %v1758 = vand.u32 %v1518, 4294901760
    %1759 = vmatpush.msra.mxu0 %v1758
    %v1760 = vand.u32 %v1517, 4294901760
    %1761 = vmatpush.msra.mxu0 %v1760
    %v1762 = vand.u32 %v1515, 4294901760
    %v1763 = vsub.f32 %v1515, %v1762
    %v1764 = vand.u32 %v1763, 4294901760
    %1765 = vmatmul.f32.gmra.mxu0 %v1764
    %v1766 = vpop.f32.mrf.mxu0
    %v1767 = vadd.f32 %v1728, %v1766
    %1768 = vdwg.mxu0
    %v1769 = vand.u32 %v1532, 4294901760
    %v1770 = vsub.f32 %v1532, %v1769
    %v1771 = vand.u32 %v1770, 4294901760
    %1772 = vmatpush.msra.mxu0 %v1771
    %v1773 = vand.u32 %v1531, 4294901760
    %v1774 = vsub.f32 %v1531, %v1773
    %v1775 = vand.u32 %v1774, 4294901760
    %1776 = vmatpush.msra.mxu0 %v1775
    %v1777 = vand.u32 %v1530, 4294901760
    %v1778 = vsub.f32 %v1530, %v1777
    %v1779 = vand.u32 %v1778, 4294901760
    %1780 = vmatpush.msra.mxu0 %v1779
    %v1781 = vand.u32 %v1529, 4294901760
    %v1782 = vsub.f32 %v1529, %v1781
    %v1783 = vand.u32 %v1782, 4294901760
    %1784 = vmatpush.msra.mxu0 %v1783
    %v1785 = vand.u32 %v1528, 4294901760
    %v1786 = vsub.f32 %v1528, %v1785
    %v1787 = vand.u32 %v1786, 4294901760
    %1788 = vmatpush.msra.mxu0 %v1787
    %v1789 = vand.u32 %v1527, 4294901760
    %v1790 = vsub.f32 %v1527, %v1789
    %v1791 = vand.u32 %v1790, 4294901760
    %1792 = vmatpush.msra.mxu0 %v1791
    %v1793 = vand.u32 %v1526, 4294901760
    %v1794 = vsub.f32 %v1526, %v1793
    %v1795 = vand.u32 %v1794, 4294901760
    %1796 = vmatpush.msra.mxu0 %v1795
    %v1797 = vand.u32 %v1525, 4294901760
    %v1798 = vsub.f32 %v1525, %v1797
    %v1799 = vand.u32 %v1798, 4294901760
    %1800 = vmatpush.msra.mxu0 %v1799
    %v1801 = vand.u32 %v1524, 4294901760
    %v1802 = vsub.f32 %v1524, %v1801
    %v1803 = vand.u32 %v1802, 4294901760
    %1804 = vmatpush.msra.mxu0 %v1803
    %v1805 = vand.u32 %v1523, 4294901760
    %v1806 = vsub.f32 %v1523, %v1805
    %v1807 = vand.u32 %v1806, 4294901760
    %1808 = vmatpush.msra.mxu0 %v1807
    %v1809 = vand.u32 %v1522, 4294901760
    %v1810 = vsub.f32 %v1522, %v1809
    %v1811 = vand.u32 %v1810, 4294901760
    %1812 = vmatpush.msra.mxu0 %v1811
    %v1813 = vand.u32 %v1521, 4294901760
    %v1814 = vsub.f32 %v1521, %v1813
    %v1815 = vand.u32 %v1814, 4294901760
    %1816 = vmatpush.msra.mxu0 %v1815
    %v1817 = vand.u32 %v1520, 4294901760
    %v1818 = vsub.f32 %v1520, %v1817
    %v1819 = vand.u32 %v1818, 4294901760
    %1820 = vmatpush.msra.mxu0 %v1819
    %v1821 = vand.u32 %v1519, 4294901760
    %v1822 = vsub.f32 %v1519, %v1821
    %v1823 = vand.u32 %v1822, 4294901760
    %1824 = vmatpush.msra.mxu0 %v1823
    %v1825 = vand.u32 %v1518, 4294901760
    %v1826 = vsub.f32 %v1518, %v1825
    %v1827 = vand.u32 %v1826, 4294901760
    %1828 = vmatpush.msra.mxu0 %v1827
    %v1829 = vand.u32 %v1517, 4294901760
    %v1830 = vsub.f32 %v1517, %v1829
    %v1831 = vand.u32 %v1830, 4294901760
    %1832 = vmatpush.msra.mxu0 %v1831
    %v1833 = vand.u32 %v1515, 4294901760
    %1834 = vmatmul.f32.gmra.mxu0 %v1833
    %v1835 = vpop.f32.mrf.mxu0
    %v1836 = vadd.f32 %v1767, %v1835
    %1837 = vdwg.mxu0
    %v1838 = vand.u32 %v1532, 4294901760
    %1839 = vmatpush.msra.mxu0 %v1838
    %v1840 = vand.u32 %v1531, 4294901760
    %1841 = vmatpush.msra.mxu0 %v1840
    %v1842 = vand.u32 %v1530, 4294901760
    %1843 = vmatpush.msra.mxu0 %v1842
    %v1844 = vand.u32 %v1529, 4294901760
    %1845 = vmatpush.msra.mxu0 %v1844
    %v1846 = vand.u32 %v1528, 4294901760
    %1847 = vmatpush.msra.mxu0 %v1846
    %v1848 = vand.u32 %v1527, 4294901760
    %1849 = vmatpush.msra.mxu0 %v1848
    %v1850 = vand.u32 %v1526, 4294901760
    %1851 = vmatpush.msra.mxu0 %v1850
    %v1852 = vand.u32 %v1525, 4294901760
    %1853 = vmatpush.msra.mxu0 %v1852
    %v1854 = vand.u32 %v1524, 4294901760
    %1855 = vmatpush.msra.mxu0 %v1854
    %v1856 = vand.u32 %v1523, 4294901760
    %1857 = vmatpush.msra.mxu0 %v1856
    %v1858 = vand.u32 %v1522, 4294901760
    %1859 = vmatpush.msra.mxu0 %v1858
    %v1860 = vand.u32 %v1521, 4294901760
    %1861 = vmatpush.msra.mxu0 %v1860
    %v1862 = vand.u32 %v1520, 4294901760
    %1863 = vmatpush.msra.mxu0 %v1862
    %v1864 = vand.u32 %v1519, 4294901760
    %1865 = vmatpush.msra.mxu0 %v1864
    %v1866 = vand.u32 %v1518, 4294901760
    %1867 = vmatpush.msra.mxu0 %v1866
    %v1868 = vand.u32 %v1517, 4294901760
    %1869 = vmatpush.msra.mxu0 %v1868
    %v1870 = vand.u32 %v1515, 4294901760
    %1871 = vmatmul.f32.gmra.mxu0 %v1870
    %v1872 = vpop.f32.mrf.mxu0
    %v1873 = vadd.f32 %v1836, %v1872
    %1874 = vdwg.mxu0
    %v1875 = vmax.f32 %v1873, 0.0
    %1876 = vst [vmem:[#allocation10] sm:$0xff] %v1875
    // Predicated region
    $region34: #{tpu_custom_call.1} parent=1 // pred_check
      _
    $region35: #{tpu_custom_call.1} parent=1 // pred_check_branch
      %1878 = sbr.rel (0) target = $region37
    $region36: #{tpu_custom_call.1} parent=1 // pred_region
      %1880 = vsyncadd [#allocation4], 0
      %s1882 = sshll.u32 [#allocation10], 4
      %s1883 = int_to_ptr.vmem [resolvable:$true] %s1882
      %s1884 = sshll.u32 %s4, 4
      %s1885 = int_to_ptr.hbm [resolvable:$true] %s1884
      %1887 = dma.vmem_to_hbm [thread:$0]  %s1883, 128, %s1885, [#allocation4]
    $region37: #{tpu_custom_call.1} parent=1 // pred_fallthru
      _
    // Predicated region
    $region38: #{tpu_custom_call.1} parent=1 // pred_check
      _
    $region39: #{tpu_custom_call.1} parent=1 // pred_check_branch
      %1889 = sbr.rel (0) target = $region41
    $region40: #{tpu_custom_call.1} parent=1 // pred_region
      %1891 = dma.done [#allocation4], 128
    $region41: #{tpu_custom_call.1} parent=1 // pred_fallthru
      _
    %1892 = vsyncpa [#allocation3], 1
    %1893 = vsyncpa [#allocation6], 1
    %1894 = vsyncpa [#allocation9], 1
    %1895 = vsyncpa [#allocation4], 1

</llo_original>
